<compile_context>
chip_gen: v7x
topology: tpu7x:2x2x1
jax: 0.10.0
libtpu: 0.0.40
codegen_flags: <defaults>
</compile_context>

<pallas_src>
import functools

import jax
import jax.numpy as jnp
from jax import lax
from jax.experimental import pallas as pl
from jax.experimental.pallas import tpu as pltpu


def _node_kernel(a_ik_ref, a_ki_ref, xs_ref, xd_ref, bias_ref, w_ref,
                 out_ref, comp_ref):
    """Accumulate [x | A@x | A^T@x] in one VMEM scratch, then fused linear."""
    din = xs_ref.shape[1]
    k = pl.program_id(1)

    @pl.when(k == 0)
    def _init():
        comp_ref[...] = jnp.zeros_like(comp_ref)

    x_k = xs_ref[...]                                # (Tk, Din) bf16 source tile
    a_ik = a_ik_ref[...].astype(jnp.bfloat16)        # (Ti, Tk) int8 -> bf16, A[i, k]
    a_ki = a_ki_ref[...].astype(jnp.bfloat16)        # (Tk, Ti) int8 -> bf16, A[k, i]

    # Forward relation: (A @ x)[i-tile], accumulated over source tiles k.
    comp_ref[:, din:2 * din] += jnp.dot(
        a_ik, x_k, preferred_element_type=jnp.float32)

    # 'rev-' relation: (A^T @ x)[i-tile].  Contract dim 0 of both operands so
    # the transposed-LHS product stays inside the matmul lowering (no explicit
    # per-step (Tk, Ti) transpose in front of the MXU push).
    comp_ref[:, 2 * din:3 * din] += lax.dot_general(
        a_ki, x_k,
        dimension_numbers=(((0,), (0,)), ((), ())),
        preferred_element_type=jnp.float32)

    @pl.when(k == pl.num_programs(1) - 1)
    def _finalize():
        # comp = [x_i | A@x | A^T@x] already laid out in the scratch -> one
        # fused K = 3*Din matmul, no concatenate copy.
        comp_ref[:, :din] = xd_ref[...]
        out = jnp.dot(comp_ref[...], w_ref[...],
                      preferred_element_type=jnp.float32)
        out_ref[...] = (out + bias_ref[...]).astype(out_ref.dtype)


@functools.partial(jax.jit, static_argnames=("tile_i", "tile_k"))
def comp_graph_conv(x, a_i8, deg_f, deg_r, r_feats, params, *,
                    tile_i=256, tile_k=256):
    """CompGraphConv forward ('sub' composition, no activation / BN / dropout).

    x       : (N, Din)  f32 node features
    a_i8    : (N, N)    int8 dense adjacency of the forward relation,
                        a_i8[d, s] = #edges s -> d (exact for counts <= 127).
                        The 'rev-' relation is a_i8^T and is never materialized.
    deg_f   : (N,)      in-degree under the forward relation  (= A.sum(1))
    deg_r   : (N,)      in-degree under the 'rev-' relation    (= A.sum(0))
    r_feats : (3, Din)  relation features [forward, 'rev-', self-loop]
    params  : W_O/W_I/W_S/W_R stored pre-transposed as (Din, Dout); b_* as (1, Dout)
    """
    N, din = x.shape
    dout = params["W_O"].shape[1]
    assert N % tile_i == 0 and N % tile_k == 0, "demo assumes tile-divisible N"

    # ---- host-side (XLA) folding: stacked weight + per-node bias ------------
    w_stack = jnp.concatenate(
        [params["W_S"], params["W_O"], params["W_I"]], axis=0)        # (3*Din, Dout)
    c_s = params["b_S"] - r_feats[2:3, :] @ params["W_S"]             # (1, Dout)
    c_o = params["b_O"] - r_feats[0:1, :] @ params["W_O"]
    c_i = params["b_I"] - r_feats[1:2, :] @ params["W_I"]
    bias_total = (c_s
                  + deg_f[:, None].astype(jnp.float32) * c_o
                  + deg_r[:, None].astype(jnp.float32) * c_i)         # (N, Dout)

    # bf16 copy of x for the MXU adjacency matmuls (A itself is exact in bf16
    # after the in-kernel int8 upcast); the dest/self stream stays f32.
    x_src = x.astype(jnp.bfloat16)

    n_i = N // tile_i
    n_k = N // tile_k
    grid = (n_i, n_k)

    cost = pl.CostEstimate(
        flops=int(2 * 2 * N * N * din + 2 * N * (3 * din) * dout),
        transcendentals=0,
        bytes_accessed=int(2 * N * N * 1                 # two int8 A streams
                           + n_i * N * din * 2           # x source re-stream (bf16)
                           + N * din * 4                 # x dest tiles (f32)
                           + N * dout * 4                # folded bias
                           + 3 * din * dout * 4          # stacked weights
                           + N * dout * 4),              # node output
    )

    node_out = pl.pallas_call(
        _node_kernel,
        out_shape=jax.ShapeDtypeStruct((N, dout), jnp.float32),
        grid_spec=pltpu.PrefetchScalarGridSpec(
            num_scalar_prefetch=0,
            grid=grid,
            in_specs=[
                pl.BlockSpec((tile_i, tile_k), lambda i, k: (i, k)),    # A[i, k]   (fwd)
                pl.BlockSpec((tile_k, tile_i), lambda i, k: (k, i)),    # A[k, i]   ('rev-')
                pl.BlockSpec((tile_k, din), lambda i, k: (k, 0)),       # x, source tile (bf16)
                pl.BlockSpec((tile_i, din), lambda i, k: (i, 0)),       # x, dest tile (f32, self)
                pl.BlockSpec((tile_i, dout), lambda i, k: (i, 0)),      # folded bias
                pl.BlockSpec((3 * din, dout), lambda i, k: (0, 0)),     # stacked weights
            ],
            out_specs=pl.BlockSpec((tile_i, dout), lambda i, k: (i, 0)),
            scratch_shapes=[
                pltpu.VMEM((tile_i, 3 * din), jnp.float32),   # [x_i | A@x | A^T@x]
            ],
        ),
        compiler_params=pltpu.CompilerParams(
            dimension_semantics=("parallel", "arbitrary"),
            vmem_limit_bytes=32 * 1024 * 1024,
        ),
        cost_estimate=cost,
    )(a_i8, a_i8, x_src, x, bias_total, w_stack)

    # Relation branch: tiny (3, Din) @ (Din, Dout) + b; a Pallas launch costs
    # more than the math, so it stays in plain XLA next to the bias folding.
    rel_out = r_feats @ params["W_R"] + params["b_R"]

    return node_out, rel_out


def reference(x, src, dst, r_feats, params, n_nodes, out_dim):
    """Pure-JAX edge-list reference matching the PyTorch/DGL semantics."""
    # forward relation: edges src -> dst, h_e = r_feats[0], uses W_O
    comp_f = x[src] - r_feats[0][None, :]
    msg_f = comp_f @ params["W_O"] + params["b_O"]
    out_f = jnp.zeros((n_nodes, out_dim), jnp.float32).at[dst].add(msg_f)
    # reverse relation: edges dst -> src, h_e = r_feats[1], uses W_I
    comp_r = x[dst] - r_feats[1][None, :]
    msg_r = comp_r @ params["W_I"] + params["b_I"]
    out_r = jnp.zeros((n_nodes, out_dim), jnp.float32).at[src].add(msg_r)
    # self branch
    h_self = (x - r_feats[2][None, :]) @ params["W_S"] + params["b_S"]
    nodes = h_self + out_f + out_r
    rels = r_feats @ params["W_R"] + params["b_R"]
    return nodes, rels


if __name__ == "__main__":
    N = 512        # nodes (2 destination-row tiles x 2 contraction tiles)
    E = 2048       # forward edges; 'rev-' relation = reversed edges
    IN_DIM = 128   # lane-aligned so the in-scratch layout is clean
    OUT_DIM = 128  # lane-dense output -> unmasked stores
    TILE_I = 256   # >= 2 parallel destination tiles keeps both v7x TCs busy
    TILE_K = 256

    key = jax.random.PRNGKey(0)
    keys = jax.random.split(key, 12)

    x = jax.random.normal(keys[0], (N, IN_DIM), jnp.float32)
    r_feats = jax.random.normal(keys[1], (3, IN_DIM), jnp.float32)  # [fwd, rev, self]

    src = jax.random.randint(keys[2], (E,), 0, N)
    dst = jax.random.randint(keys[3], (E,), 0, N)

    scale = 1.0 / jnp.sqrt(jnp.float32(IN_DIM))
    params = {
        "W_O": jax.random.uniform(keys[4], (IN_DIM, OUT_DIM), jnp.float32, -scale, scale),
        "b_O": jax.random.uniform(keys[5], (1, OUT_DIM), jnp.float32, -scale, scale),
        "W_I": jax.random.uniform(keys[6], (IN_DIM, OUT_DIM), jnp.float32, -scale, scale),
        "b_I": jax.random.uniform(keys[7], (1, OUT_DIM), jnp.float32, -scale, scale),
        "W_S": jax.random.uniform(keys[8], (IN_DIM, OUT_DIM), jnp.float32, -scale, scale),
        "b_S": jax.random.uniform(keys[9], (1, OUT_DIM), jnp.float32, -scale, scale),
        "W_R": jax.random.uniform(keys[10], (IN_DIM, OUT_DIM), jnp.float32, -scale, scale),
        "b_R": jax.random.uniform(keys[11], (1, OUT_DIM), jnp.float32, -scale, scale),
    }

    # Plain-JAX glue: dense forward adjacency (dst-major) + per-relation
    # in-degrees.  a_rev is never built (a_rev == A^T, handled in-kernel).
    a_counts = jnp.zeros((N, N), jnp.float32).at[dst, src].add(1.0)
    assert float(a_counts.max()) <= 127.0, "int8 adjacency overflows (>127 multi-edges)"
    a_i8 = a_counts.astype(jnp.int8)            # exact: integer edge counts <= 127
    deg_f = a_counts.sum(axis=1)                # in-degree under forward relation
    deg_r = a_counts.sum(axis=0)                # in-degree under 'rev-' relation

    node_out, rel_out = comp_graph_conv(
        x, a_i8, deg_f, deg_r, r_feats, params, tile_i=TILE_I, tile_k=TILE_K)
    node_out = jax.block_until_ready(node_out)
    rel_out = jax.block_until_ready(rel_out)

    node_ref, rel_ref = reference(x, src, dst, r_feats, params, N, OUT_DIM)

    # Tolerance 1e-2: feeding the MXU bf16 x (for full bf16 rate) introduces
    # ~2^-9 relative rounding on the message terms (accumulation stays f32);
    # any structural/semantic bug would produce O(1) errors.
    assert jnp.allclose(node_out, node_ref, atol=1e-2, rtol=1e-2), "node output mismatch"
    assert jnp.allclose(rel_out, rel_ref, atol=1e-3, rtol=1e-3), "relation output mismatch"

    # TODO(synk): 'mul' / 'ccorr' compositions, batchnorm, dropout and activation
    # (all disabled at module defaults) are not implemented; only the 'sub' path.
    print("KERNEL_OK")
</pallas_src>

<mosaic_0001>
module attributes {stable_mosaic.version = 11 : i64} {
  func.func @_node_kernel(%arg0: i32, %arg1: i32, %arg2: memref<256x256xi8, #tpu.memory_space<vmem>>, %arg3: memref<256x256xi8, #tpu.memory_space<vmem>>, %arg4: memref<256x128xbf16, #tpu.memory_space<vmem>>, %arg5: memref<256x128xf32, #tpu.memory_space<vmem>>, %arg6: memref<256x128xf32, #tpu.memory_space<vmem>>, %arg7: memref<384x128xf32, #tpu.memory_space<vmem>>, %arg8: memref<256x128xf32, #tpu.memory_space<vmem>>, %arg9: memref<256x384xf32, #tpu.memory_space<vmem>>) attributes {dimension_semantics = [#tpu.dimension_semantics<parallel>, #tpu.dimension_semantics<arbitrary>], iteration_bounds = array<i64: 2, 2>, scalar_prefetch = 0 : i64, scratch_operands = 1 : i64, tpu.core_type = #tpu.core_type<tc>, window_params = [{transform_indices = @transform_0, window_bounds = array<i64: 256, 256>}, {transform_indices = @transform_1, window_bounds = array<i64: 256, 256>}, {transform_indices = @transform_2, window_bounds = array<i64: 256, 128>}, {transform_indices = @transform_3, window_bounds = array<i64: 256, 128>}, {transform_indices = @transform_4, window_bounds = array<i64: 256, 128>}, {pipeline_mode = #tpu.pipeline_mode<synchronous>, transform_indices = @transform_5, window_bounds = array<i64: 384, 128>}, {transform_indices = @transform_6, window_bounds = array<i64: 256, 128>}]} {
    %c0_i32 = arith.constant 0 : i32
    %0 = arith.cmpi eq, %arg1, %c0_i32 : i32
    %1 = arith.extui %0 : i1 to i32
    %c0_i32_0 = arith.constant 0 : i32
    %2 = arith.cmpi ne, %1, %c0_i32_0 : i32
    scf.if %2 {
      %cst_14 = arith.constant 0.000000e+00 : f32
      %19 = vector.broadcast %cst_14 : f32 to vector<256x384xf32>
      %c0_15 = arith.constant 0 : index
      %c0_16 = arith.constant 0 : index
      %20 = vector.load %arg9[%c0_15, %c0_16] : memref<256x384xf32, #tpu.memory_space<vmem>>, vector<256x384xf32>
      tpu.vector_store %arg9[%c0_15, %c0_16], %19 {strides = array<i32>} : memref<256x384xf32, #tpu.memory_space<vmem>>, vector<256x384xf32>,
    } else {
    }
    %c0 = arith.constant 0 : index
    %c0_1 = arith.constant 0 : index
    %3 = vector.load %arg4[%c0, %c0_1] : memref<256x128xbf16, #tpu.memory_space<vmem>>, vector<256x128xbf16>
    %c0_2 = arith.constant 0 : index
    %c0_3 = arith.constant 0 : index
    %4 = vector.load %arg2[%c0_2, %c0_3] : memref<256x256xi8, #tpu.memory_space<vmem>>, vector<256x256xi8>
    %5 = arith.sitofp %4 : vector<256x256xi8> to vector<256x256xbf16>
    %c0_4 = arith.constant 0 : index
    %c0_5 = arith.constant 0 : index
    %6 = vector.load %arg3[%c0_4, %c0_5] : memref<256x256xi8, #tpu.memory_space<vmem>>, vector<256x256xi8>
    %7 = arith.sitofp %6 : vector<256x256xi8> to vector<256x256xbf16>
    %c0_6 = arith.constant 0 : index
    %c128 = arith.constant 128 : index
    %8 = vector.load %arg9[%c0_6, %c128] : memref<256x384xf32, #tpu.memory_space<vmem>>, vector<256x128xf32>
    %cst = arith.constant dense<0.000000e+00> : vector<256x128xf32>
    %9 = tpu.matmul %5, %3, %cst {dimension_numbers = #tpu.dot_dimension_numbers<[1], [0], [0], [1], [0, 0, 1, 1], [], []>} : vector<256x256xbf16>, vector<256x128xbf16>, vector<256x128xf32> -> vector<256x128xf32>
    %10 = arith.addf %8, %9 : vector<256x128xf32>
    %c0_7 = arith.constant 0 : index
    %c128_8 = arith.constant 128 : index
    %11 = vector.load %arg9[%c0_7, %c128_8] : memref<256x384xf32, #tpu.memory_space<vmem>>, vector<256x128xf32>
    tpu.vector_store %arg9[%c0_7, %c128_8], %10 {strides = array<i32>} : memref<256x384xf32, #tpu.memory_space<vmem>>, vector<256x128xf32>,
    %c0_9 = arith.constant 0 : index
    %c256 = arith.constant 256 : index
    %12 = vector.load %arg9[%c0_9, %c256] : memref<256x384xf32, #tpu.memory_space<vmem>>, vector<256x128xf32>
    %cst_10 = arith.constant dense<0.000000e+00> : vector<256x128xf32>
    %13 = tpu.matmul %7, %3, %cst_10 {dimension_numbers = #tpu.dot_dimension_numbers<[0], [0], [1], [1], [0, 1, 1, 1], [], []>} : vector<256x256xbf16>, vector<256x128xbf16>, vector<256x128xf32> -> vector<256x128xf32>
    %14 = arith.addf %12, %13 : vector<256x128xf32>
    %c0_11 = arith.constant 0 : index
    %c256_12 = arith.constant 256 : index
    %15 = vector.load %arg9[%c0_11, %c256_12] : memref<256x384xf32, #tpu.memory_space<vmem>>, vector<256x128xf32>
    tpu.vector_store %arg9[%c0_11, %c256_12], %14 {strides = array<i32>} : memref<256x384xf32, #tpu.memory_space<vmem>>, vector<256x128xf32>,
    %c1_i32 = arith.constant 1 : i32
    %16 = arith.cmpi eq, %arg1, %c1_i32 : i32
    %17 = arith.extui %16 : i1 to i32
    %c0_i32_13 = arith.constant 0 : i32
    %18 = arith.cmpi ne, %17, %c0_i32_13 : i32
    scf.if %18 {
      %c0_14 = arith.constant 0 : index
      %c0_15 = arith.constant 0 : index
      %19 = vector.load %arg5[%c0_14, %c0_15] : memref<256x128xf32, #tpu.memory_space<vmem>>, vector<256x128xf32>
      %c0_16 = arith.constant 0 : index
      %c0_17 = arith.constant 0 : index
      %20 = vector.load %arg9[%c0_16, %c0_17] : memref<256x384xf32, #tpu.memory_space<vmem>>, vector<256x128xf32>
      tpu.vector_store %arg9[%c0_16, %c0_17], %19 {strides = array<i32>} : memref<256x384xf32, #tpu.memory_space<vmem>>, vector<256x128xf32>,
      %c0_18 = arith.constant 0 : index
      %c0_19 = arith.constant 0 : index
      %21 = vector.load %arg9[%c0_18, %c0_19] : memref<256x384xf32, #tpu.memory_space<vmem>>, vector<256x384xf32>
      %c0_20 = arith.constant 0 : index
      %c0_21 = arith.constant 0 : index
      %22 = vector.load %arg7[%c0_20, %c0_21] : memref<384x128xf32, #tpu.memory_space<vmem>>, vector<384x128xf32>
      %cst_22 = arith.constant dense<0.000000e+00> : vector<256x128xf32>
      %23 = tpu.matmul %21, %22, %cst_22 {dimension_numbers = #tpu.dot_dimension_numbers<[1], [0], [0], [1], [0, 0, 1, 1], [], []>} : vector<256x384xf32>, vector<384x128xf32>, vector<256x128xf32> -> vector<256x128xf32>
      %c0_23 = arith.constant 0 : index
      %c0_24 = arith.constant 0 : index
      %24 = vector.load %arg6[%c0_23, %c0_24] : memref<256x128xf32, #tpu.memory_space<vmem>>, vector<256x128xf32>
      %25 = arith.addf %23, %24 : vector<256x128xf32>
      %c0_25 = arith.constant 0 : index
      %c0_26 = arith.constant 0 : index
      %26 = vector.load %arg8[%c0_25, %c0_26] : memref<256x128xf32, #tpu.memory_space<vmem>>, vector<256x128xf32>
      tpu.vector_store %arg8[%c0_25, %c0_26], %25 {strides = array<i32>} : memref<256x128xf32, #tpu.memory_space<vmem>>, vector<256x128xf32>,
    } else {
    }
    return
  }
  func.func @transform_0(%arg0: i32, %arg1: i32) -> (i32, i32) {
    %c0_i32 = arith.constant 0 : i32
    return %arg0, %arg1 : i32, i32
  }
  func.func @transform_1(%arg0: i32, %arg1: i32) -> (i32, i32) {
    %c0_i32 = arith.constant 0 : i32
    return %arg1, %arg0 : i32, i32
  }
  func.func @transform_2(%arg0: i32, %arg1: i32) -> (i32, i32) {
    %c0_i32 = arith.constant 0 : i32
    %c0_i32_0 = arith.constant 0 : i32
    return %arg1, %c0_i32 : i32, i32
  }
  func.func @transform_3(%arg0: i32, %arg1: i32) -> (i32, i32) {
    %c0_i32 = arith.constant 0 : i32
    %c0_i32_0 = arith.constant 0 : i32
    return %arg0, %c0_i32 : i32, i32
  }
  func.func @transform_4(%arg0: i32, %arg1: i32) -> (i32, i32) {
    %c0_i32 = arith.constant 0 : i32
    %c0_i32_0 = arith.constant 0 : i32
    return %arg0, %c0_i32 : i32, i32
  }
  func.func @transform_5(%arg0: i32, %arg1: i32) -> (i32, i32) {
    %c0_i32 = arith.constant 0 : i32
    %c0_i32_0 = arith.constant 0 : i32
    %c0_i32_1 = arith.constant 0 : i32
    return %c0_i32, %c0_i32_0 : i32, i32
  }
  func.func @transform_6(%arg0: i32, %arg1: i32) -> (i32, i32) {
    %c0_i32 = arith.constant 0 : i32
    %c0_i32_0 = arith.constant 0 : i32
    return %arg0, %c0_i32 : i32, i32
  }
}

</mosaic_0001>

<llo_original>
// kernel: comp_graph_conv.1
$region0: #{comp_graph_conv.1}
  #allocation0 [shape = 'u32[]', space=smem, size = 0x4, offset = 0x4, fixed_abs, tag = 'smem constant byte address 0x4 - core index']
  #allocation1 [shape = 'u32[144,128]{1,0:T(1,128)}', space=vmem, size = 0x12000, scoped, tag = 'internal scratch']
  #allocation2 [shape = 'f32[256,384]{1,0:T(8,128)}', space=vmem, size = 0x60000, scoped, tag = 'scratch operand']
  %s0 = inlined_call_operand.vmem [shape: s8[512,512], index: 0, kind: input, shape index: {}, may-alias: {0,1}]
  %s1 = inlined_call_operand.vmem [shape: s8[512,512], index: 1, kind: input, shape index: {}, may-alias: {0,1}]
  %s2 = inlined_call_operand.vmem [shape: bf16[512,128], index: 2, kind: input, shape index: {}]
  %s3 = inlined_call_operand.vmem [shape: f32[512,128], index: 3, kind: input, shape index: {}]
  %s4 = inlined_call_operand.vmem [shape: f32[512,128], index: 4, kind: input, shape index: {}]
  %s5 = inlined_call_operand.vmem [shape: f32[384,128], index: 5, kind: input, shape index: {}]
  %s6 = inlined_call_operand.hbm [shape: f32[512,128], index: 6, kind: output, shape index: {}]
  %s7 = sld [smem:[#allocation0]]
  $region111: #{comp_graph_conv.1} parent=0
    _
  %s9 = ssub.s32 1, %s7
  %s10 = scalar_select 0, %s9, %s7
  $region1: #{comp_graph_conv.1} parent=0
    #allocation3 [shape = 'u8[131072]{0}', space=vmem, size = 0x20000, scoped, tag = 'input window, operand 0']
    #allocation4 [shape = 'u8[131072]{0}', space=vmem, size = 0x20000, scoped, tag = 'input window, operand 1']
    #allocation5 [shape = 'u8[262144]{0}', space=vmem, size = 0x40000, scoped, tag = 'output window, operand 0']
    #allocation6 [shape = 's32[2]{0}', space=sflag, size = 0x8, scoped, tag = 'scoped memory for comp_graph_conv.1']
    %11 = vsyncpa [#allocation6], 0
    %s12 = scalar_lea.sflag [#allocation6], 1
    %13 = vsyncpa %s12, 0
    loop: start=0, step=1, limit=6
    $region2: #{comp_graph_conv.1} parent=1 // loop_pre_header
      _
    $region3: #{comp_graph_conv.1} parent=1 // loop_header
      %s15 = sphi 0, %s19
      %p16 = scmp.ge.s32.totalorder %s15, 6
      %s22 = sphi 0, %s34
      %s23 = sphi 0, %s30
      %s24 = sphi 0, %s22
      %s25 = sphi 0, %s23
      %s26 = sphi 0, %s24
      %s27 = sphi 0, %s25
      %s39 = sphi 0, %s41
      %s42 = sphi 0, %s39
      %s43 = sphi 0, %s42
      %s59 = sphi 0, %s43
      %s67 = sphi 0, %s69
      %s70 = sphi 0, %s67
      %s71 = sphi 0, %s70
      %s87 = sphi 0, %s71
      %s93 = sphi 0, %s95
      %s96 = sphi 0, %s93
      %s97 = sphi 0, %s96
      %s113 = sphi 0, %s97
      %s119 = sphi 0, %s121
      %s122 = sphi 0, %s119
      %s123 = sphi 0, %s122
      %s139 = sphi 0, %s123
      %s145 = sphi 0, %s147
      %s148 = sphi 0, %s145
      %s149 = sphi 0, %s148
      %s165 = sphi 0, %s149
      %s169 = sphi 0, %s169
      %s171 = sphi 0, %s169
      %s172 = sphi 0, %s171
      %s186 = sphi 0, %s172
      %s192 = sphi 0, %s194
      %s195 = sphi 0, %s192
      %s196 = sphi 0, %s195
      %s212 = sphi 0, %s196
    $region4: #{comp_graph_conv.1} parent=1 // loop_header_branch
      %18 = sbr.rel (%p16) target = $region8
    $region5: #{comp_graph_conv.1} parent=1 // loop_body
      %s20 = ssub.s32 %s15, 1
      %s21 = ssub.s32 %s15, 2
      %s28 = sadd.s32 1, %s23
      %p29 = scmp.ge.s32.totalorder %s28, 2
      %s30 = scalar_select %p29, 0, %s28
      %s31 = sadd.s32 1, %s22
      %s32 = scalar_select %p29, %s31, %s22
      %p33 = scmp.ge.s32.totalorder %s32, 2
      %s34 = scalar_select %p33, 0, %s32
      %s35 = ssub.s32 %s22, %s34
      %s36 = ssub.s32 %s23, %s30
      %s37 = sor.u32 %s35, %s36
      %p38 = scmp.eq.s32.totalorder %s37, 0
      %s40 = sadd.s32 %s39, 1
      %s41 = scalar_select %p38, %s39, %s40
      %p44 = pneg %p38
      %p45 = scmp.eq.s32.totalorder %s15, 3
      %p46 = por %p44, %p45
      %p47 = scmp.ne.s32.totalorder %s39, %s42
      %p48 = scmp.eq.s32.totalorder %s15, 0
      %p49 = por %p47, %p48
      %p50 = scmp.ne.s32.totalorder %s39, %s42
      %p51 = scmp.eq.s32.totalorder %s20, 3
      %p52 = por %p50, %p51
      %p53 = scmp.ne.s32.totalorder %s42, %s43
      %p54 = scmp.eq.s32.totalorder %s20, 0
      %p55 = por %p53, %p54
      %p56 = scmp.ne.s32.totalorder %s42, %s43
      %p57 = scmp.eq.s32.totalorder %s21, 3
      %p58 = por %p56, %p57
      %p60 = scmp.ne.s32.totalorder %s43, %s59
      %p61 = scmp.eq.s32.totalorder %s21, 0
      %p62 = por %p60, %p61
      %s63 = ssub.s32 %s23, %s30
      %s64 = ssub.s32 %s22, %s34
      %s65 = sor.u32 %s63, %s64
      %p66 = scmp.eq.s32.totalorder %s65, 0
      %s68 = sadd.s32 %s67, 1
      %s69 = scalar_select %p66, %s67, %s68
      %p72 = pneg %p66
      %p73 = scmp.eq.s32.totalorder %s15, 3
      %p74 = por %p72, %p73
      %p75 = scmp.ne.s32.totalorder %s67, %s70
      %p76 = scmp.eq.s32.totalorder %s15, 0
      %p77 = por %p75, %p76
      %p78 = scmp.ne.s32.totalorder %s67, %s70
      %p79 = scmp.eq.s32.totalorder %s20, 3
      %p80 = por %p78, %p79
      %p81 = scmp.ne.s32.totalorder %s70, %s71
      %p82 = scmp.eq.s32.totalorder %s20, 0
      %p83 = por %p81, %p82
      %p84 = scmp.ne.s32.totalorder %s70, %s71
      %p85 = scmp.eq.s32.totalorder %s21, 3
      %p86 = por %p84, %p85
      %p88 = scmp.ne.s32.totalorder %s71, %s87
      %p89 = scmp.eq.s32.totalorder %s21, 0
      %p90 = por %p88, %p89
      %s91 = ssub.s32 %s23, %s30
      %p92 = scmp.eq.s32.totalorder %s91, 0
      %s94 = sadd.s32 %s93, 1
      %s95 = scalar_select %p92, %s93, %s94
      %p98 = pneg %p92
      %p99 = scmp.eq.s32.totalorder %s15, 3
      %p100 = por %p98, %p99
      %p101 = scmp.ne.s32.totalorder %s93, %s96
      %p102 = scmp.eq.s32.totalorder %s15, 0
      %p103 = por %p101, %p102
      %p104 = scmp.ne.s32.totalorder %s93, %s96
      %p105 = scmp.eq.s32.totalorder %s20, 3
      %p106 = por %p104, %p105
      %p107 = scmp.ne.s32.totalorder %s96, %s97
      %p108 = scmp.eq.s32.totalorder %s20, 0
      %p109 = por %p107, %p108
      %p110 = scmp.ne.s32.totalorder %s96, %s97
      %p111 = scmp.eq.s32.totalorder %s21, 3
      %p112 = por %p110, %p111
      %p114 = scmp.ne.s32.totalorder %s97, %s113
      %p115 = scmp.eq.s32.totalorder %s21, 0
      %p116 = por %p114, %p115
      %s117 = ssub.s32 %s22, %s34
      %p118 = scmp.eq.s32.totalorder %s117, 0
      %s120 = sadd.s32 %s119, 1
      %s121 = scalar_select %p118, %s119, %s120
      %p124 = pneg %p118
      %p125 = scmp.eq.s32.totalorder %s15, 3
      %p126 = por %p124, %p125
      %p127 = scmp.ne.s32.totalorder %s119, %s122
      %p128 = scmp.eq.s32.totalorder %s15, 0
      %p129 = por %p127, %p128
      %p130 = scmp.ne.s32.totalorder %s119, %s122
      %p131 = scmp.eq.s32.totalorder %s20, 3
      %p132 = por %p130, %p131
      %p133 = scmp.ne.s32.totalorder %s122, %s123
      %p134 = scmp.eq.s32.totalorder %s20, 0
      %p135 = por %p133, %p134
      %p136 = scmp.ne.s32.totalorder %s122, %s123
      %p137 = scmp.eq.s32.totalorder %s21, 3
      %p138 = por %p136, %p137
      %p140 = scmp.ne.s32.totalorder %s123, %s139
      %p141 = scmp.eq.s32.totalorder %s21, 0
      %p142 = por %p140, %p141
      %s143 = ssub.s32 %s22, %s34
      %p144 = scmp.eq.s32.totalorder %s143, 0
      %s146 = sadd.s32 %s145, 1
      %s147 = scalar_select %p144, %s145, %s146
      %p150 = pneg %p144
      %p151 = scmp.eq.s32.totalorder %s15, 3
      %p152 = por %p150, %p151
      %p153 = scmp.ne.s32.totalorder %s145, %s148
      %p154 = scmp.eq.s32.totalorder %s15, 0
      %p155 = por %p153, %p154
      %p156 = scmp.ne.s32.totalorder %s145, %s148
      %p157 = scmp.eq.s32.totalorder %s20, 3
      %p158 = por %p156, %p157
      %p159 = scmp.ne.s32.totalorder %s148, %s149
      %p160 = scmp.eq.s32.totalorder %s20, 0
      %p161 = por %p159, %p160
      %p162 = scmp.ne.s32.totalorder %s148, %s149
      %p163 = scmp.eq.s32.totalorder %s21, 3
      %p164 = por %p162, %p163
      %p166 = scmp.ne.s32.totalorder %s149, %s165
      %p167 = scmp.eq.s32.totalorder %s21, 0
      %p168 = por %p166, %p167
      %s170 = sadd.s32 %s169, 1
      %p173 = scmp.eq.s32.totalorder %s15, 3
      %p174 = scmp.ne.s32.totalorder %s169, %s171
      %p175 = scmp.eq.s32.totalorder %s15, 0
      %p176 = por %p174, %p175
      %p177 = scmp.ne.s32.totalorder %s169, %s171
      %p178 = scmp.eq.s32.totalorder %s20, 3
      %p179 = por %p177, %p178
      %p180 = scmp.ne.s32.totalorder %s171, %s172
      %p181 = scmp.eq.s32.totalorder %s20, 0
      %p182 = por %p180, %p181
      %p183 = scmp.ne.s32.totalorder %s171, %s172
      %p184 = scmp.eq.s32.totalorder %s21, 3
      %p185 = por %p183, %p184
      %p187 = scmp.ne.s32.totalorder %s172, %s186
      %p188 = scmp.eq.s32.totalorder %s21, 0
      %p189 = por %p187, %p188
      %s190 = ssub.s32 %s22, %s34
      %p191 = scmp.eq.s32.totalorder %s190, 0
      %s193 = sadd.s32 %s192, 1
      %s194 = scalar_select %p191, %s192, %s193
      %p197 = pneg %p191
      %p198 = scmp.eq.s32.totalorder %s15, 3
      %p199 = por %p197, %p198
      %p200 = scmp.ne.s32.totalorder %s192, %s195
      %p201 = scmp.eq.s32.totalorder %s15, 0
      %p202 = por %p200, %p201
      %p203 = scmp.ne.s32.totalorder %s192, %s195
      %p204 = scmp.eq.s32.totalorder %s20, 3
      %p205 = por %p203, %p204
      %p206 = scmp.ne.s32.totalorder %s195, %s196
      %p207 = scmp.eq.s32.totalorder %s20, 0
      %p208 = por %p206, %p207
      %p209 = scmp.ne.s32.totalorder %s195, %s196
      %p210 = scmp.eq.s32.totalorder %s21, 3
      %p211 = por %p209, %p210
      %p213 = scmp.ne.s32.totalorder %s196, %s212
      %p214 = scmp.eq.s32.totalorder %s21, 0
      %p215 = por %p213, %p214
      %p216 = scmp.le.s32.totalorder 1, %s15
      %p217 = scmp.lt.s32.totalorder %s15, 5
      %p218 = pnand %p216, %p217
      %p219 = pneg %p218
      // Predicated region
      $region9: #{comp_graph_conv.1} parent=5 // pred_check
        _
      $region10: #{comp_graph_conv.1} parent=5 // pred_check_branch
        %221 = sbr.rel (%p218) target = $region12
      $region11: #{comp_graph_conv.1} parent=5 // pred_region
        %s222 = ssub.s32 %s15, 1
        // Predicated region
        $region13: #{comp_graph_conv.1} parent=11 // pred_check
          %p223 = pneg %p182
        $region14: #{comp_graph_conv.1} parent=11 // pred_check_branch
          %225 = sbr.rel (%p223) target = $region16
        $region15: #{comp_graph_conv.1} parent=11 // pred_region
          _
        $region16: #{comp_graph_conv.1} parent=11 // pred_fallthru
          _
      $region12: #{comp_graph_conv.1} parent=5 // pred_fallthru
        _
      %p226 = scmp.lt.s32.totalorder %s15, 4
      // Predicated region
      $region17: #{comp_graph_conv.1} parent=5 // pred_check
        %p227 = pneg %p226
      $region18: #{comp_graph_conv.1} parent=5 // pred_check_branch
        %229 = sbr.rel (%p227) target = $region20
      $region19: #{comp_graph_conv.1} parent=5 // pred_region
        // Predicated region
        $region21: #{comp_graph_conv.1} parent=19 // pred_check
          %p230 = pneg %p49
        $region22: #{comp_graph_conv.1} parent=19 // pred_check_branch
          %232 = sbr.rel (%p230) target = $region24
        $region23: #{comp_graph_conv.1} parent=19 // pred_region
          %s233 = sand.u32 %s39, 1
          %s234 = sand.u32 %s39, 1
          %s235 = smul.addr %s234, 128
          %s236 = scalar_lea.vmem [#allocation3], %s235
          %s237 = smul.u32 8, %s22
          %s238 = smul.u32 2, %s23
          %s239 = smul.addr %s237, 4
          %s240 = sadd.s32 %s238, %s239
          %s241 = smul.addr %s240, 8
          %s242 = scalar_lea.vmem %s0, %s241
          // Predicated region
          $region25: #{comp_graph_conv.1} parent=23 // pred_check
            _
          $region26: #{comp_graph_conv.1} parent=23 // pred_check_branch
            %244 = sbr.rel (0) target = $region28
          $region27: #{comp_graph_conv.1} parent=23 // pred_region
            // Predicated region
            $region29: #{comp_graph_conv.1} parent=27 // pred_check
              _
            $region30: #{comp_graph_conv.1} parent=27 // pred_check_branch
              %246 = sbr.rel (0) target = $region32
            $region31: #{comp_graph_conv.1} parent=27 // pred_region
              loop: start=0, step=1, limit=1
              $region33: #{comp_graph_conv.1} parent=31 // loop_pre_header
                _
              $region34: #{comp_graph_conv.1} parent=31 // loop_header
                %s248 = sphi 0, %s252
                %p249 = scmp.ge.s32.totalorder %s248, 1
                %s253 = sphi %s242, %s242
                %s254 = sphi %s236, %s236
              $region35: #{comp_graph_conv.1} parent=31 // loop_header_branch
                %251 = sbr.rel (%p249) target = $region39
              $region36: #{comp_graph_conv.1} parent=31 // loop_body
                %v255 = vld [vmem:[%s253] sm:$0xff]
                %256 = vst [vmem:[%s254] sm:$0xff] %v255
                %v257 = vld [vmem:[%s253 + $0x8] sm:$0xff]
                %258 = vst [vmem:[%s254 + $0x8] sm:$0xff] %v257
                %v259 = vld [vmem:[%s253 + $0x20] sm:$0xff]
                %260 = vst [vmem:[%s254 + $0x10] sm:$0xff] %v259
                %v261 = vld [vmem:[%s253 + $0x28] sm:$0xff]
                %262 = vst [vmem:[%s254 + $0x18] sm:$0xff] %v261
                %v263 = vld [vmem:[%s253 + $0x40] sm:$0xff]
                %264 = vst [vmem:[%s254 + $0x20] sm:$0xff] %v263
                %v265 = vld [vmem:[%s253 + $0x48] sm:$0xff]
                %266 = vst [vmem:[%s254 + $0x28] sm:$0xff] %v265
                %v267 = vld [vmem:[%s253 + $0x60] sm:$0xff]
                %268 = vst [vmem:[%s254 + $0x30] sm:$0xff] %v267
                %v269 = vld [vmem:[%s253 + $0x68] sm:$0xff]
                %270 = vst [vmem:[%s254 + $0x38] sm:$0xff] %v269
                %v271 = vld [vmem:[%s253 + $0x80] sm:$0xff]
                %272 = vst [vmem:[%s254 + $0x40] sm:$0xff] %v271
                %v273 = vld [vmem:[%s253 + $0x88] sm:$0xff]
                %274 = vst [vmem:[%s254 + $0x48] sm:$0xff] %v273
                %v275 = vld [vmem:[%s253 + $0xa0] sm:$0xff]
                %276 = vst [vmem:[%s254 + $0x50] sm:$0xff] %v275
                %v277 = vld [vmem:[%s253 + $0xa8] sm:$0xff]
                %278 = vst [vmem:[%s254 + $0x58] sm:$0xff] %v277
                %v279 = vld [vmem:[%s253 + $0xc0] sm:$0xff]
                %280 = vst [vmem:[%s254 + $0x60] sm:$0xff] %v279
                %v281 = vld [vmem:[%s253 + $0xc8] sm:$0xff]
                %282 = vst [vmem:[%s254 + $0x68] sm:$0xff] %v281
                %v283 = vld [vmem:[%s253 + $0xe0] sm:$0xff]
                %284 = vst [vmem:[%s254 + $0x70] sm:$0xff] %v283
                %v285 = vld [vmem:[%s253 + $0xe8] sm:$0xff]
                %286 = vst [vmem:[%s254 + $0x78] sm:$0xff] %v285
              $region37: #{comp_graph_conv.1} parent=31 // loop_footer
                %s252 = sadd.s32 1, %s248
              $region38: #{comp_graph_conv.1} parent=31 // loop_footer_branch
                %247 = sbr.rel target = $region34
              $region39: #{comp_graph_conv.1} parent=31 // loop_exit
                _
            $region32: #{comp_graph_conv.1} parent=27 // pred_fallthru
              _
            // Predicated region
            $region40: #{comp_graph_conv.1} parent=27 // pred_check
              _
            $region41: #{comp_graph_conv.1} parent=27 // pred_check_branch
              %288 = sbr.rel target = $region43
            $region42: #{comp_graph_conv.1} parent=27 // pred_region
              _
            $region43: #{comp_graph_conv.1} parent=27 // pred_fallthru
              _
          $region28: #{comp_graph_conv.1} parent=23 // pred_fallthru
            _
          %289 = vnop
        $region24: #{comp_graph_conv.1} parent=19 // pred_fallthru
          _
        // Predicated region
        $region44: #{comp_graph_conv.1} parent=19 // pred_check
          %p290 = pneg %p77
        $region45: #{comp_graph_conv.1} parent=19 // pred_check_branch
          %292 = sbr.rel (%p290) target = $region47
        $region46: #{comp_graph_conv.1} parent=19 // pred_region
          %s293 = sand.u32 %s67, 1
          %s294 = sand.u32 %s67, 1
          %s295 = smul.addr %s294, 128
          %s296 = scalar_lea.vmem [#allocation4], %s295
          %s297 = smul.u32 8, %s23
          %s298 = smul.u32 2, %s22
          %s299 = smul.addr %s297, 4
          %s300 = sadd.s32 %s298, %s299
          %s301 = smul.addr %s300, 8
          %s302 = scalar_lea.vmem %s1, %s301
          // Predicated region
          $region48: #{comp_graph_conv.1} parent=46 // pred_check
            _
          $region49: #{comp_graph_conv.1} parent=46 // pred_check_branch
            %304 = sbr.rel (0) target = $region51
          $region50: #{comp_graph_conv.1} parent=46 // pred_region
            // Predicated region
            $region52: #{comp_graph_conv.1} parent=50 // pred_check
              _
            $region53: #{comp_graph_conv.1} parent=50 // pred_check_branch
              %306 = sbr.rel (0) target = $region55
            $region54: #{comp_graph_conv.1} parent=50 // pred_region
              loop: start=0, step=1, limit=1
              $region56: #{comp_graph_conv.1} parent=54 // loop_pre_header
                _
              $region57: #{comp_graph_conv.1} parent=54 // loop_header
                %s308 = sphi 0, %s312
                %p309 = scmp.ge.s32.totalorder %s308, 1
                %s313 = sphi %s302, %s302
                %s314 = sphi %s296, %s296
              $region58: #{comp_graph_conv.1} parent=54 // loop_header_branch
                %311 = sbr.rel (%p309) target = $region62
              $region59: #{comp_graph_conv.1} parent=54 // loop_body
                %v315 = vld [vmem:[%s313] sm:$0xff]
                %316 = vst [vmem:[%s314] sm:$0xff] %v315
                %v317 = vld [vmem:[%s313 + $0x8] sm:$0xff]
                %318 = vst [vmem:[%s314 + $0x8] sm:$0xff] %v317
                %v319 = vld [vmem:[%s313 + $0x20] sm:$0xff]
                %320 = vst [vmem:[%s314 + $0x10] sm:$0xff] %v319
                %v321 = vld [vmem:[%s313 + $0x28] sm:$0xff]
                %322 = vst [vmem:[%s314 + $0x18] sm:$0xff] %v321
                %v323 = vld [vmem:[%s313 + $0x40] sm:$0xff]
                %324 = vst [vmem:[%s314 + $0x20] sm:$0xff] %v323
                %v325 = vld [vmem:[%s313 + $0x48] sm:$0xff]
                %326 = vst [vmem:[%s314 + $0x28] sm:$0xff] %v325
                %v327 = vld [vmem:[%s313 + $0x60] sm:$0xff]
                %328 = vst [vmem:[%s314 + $0x30] sm:$0xff] %v327
                %v329 = vld [vmem:[%s313 + $0x68] sm:$0xff]
                %330 = vst [vmem:[%s314 + $0x38] sm:$0xff] %v329
                %v331 = vld [vmem:[%s313 + $0x80] sm:$0xff]
                %332 = vst [vmem:[%s314 + $0x40] sm:$0xff] %v331
                %v333 = vld [vmem:[%s313 + $0x88] sm:$0xff]
                %334 = vst [vmem:[%s314 + $0x48] sm:$0xff] %v333
                %v335 = vld [vmem:[%s313 + $0xa0] sm:$0xff]
                %336 = vst [vmem:[%s314 + $0x50] sm:$0xff] %v335
                %v337 = vld [vmem:[%s313 + $0xa8] sm:$0xff]
                %338 = vst [vmem:[%s314 + $0x58] sm:$0xff] %v337
                %v339 = vld [vmem:[%s313 + $0xc0] sm:$0xff]
                %340 = vst [vmem:[%s314 + $0x60] sm:$0xff] %v339
                %v341 = vld [vmem:[%s313 + $0xc8] sm:$0xff]
                %342 = vst [vmem:[%s314 + $0x68] sm:$0xff] %v341
                %v343 = vld [vmem:[%s313 + $0xe0] sm:$0xff]
                %344 = vst [vmem:[%s314 + $0x70] sm:$0xff] %v343
                %v345 = vld [vmem:[%s313 + $0xe8] sm:$0xff]
                %346 = vst [vmem:[%s314 + $0x78] sm:$0xff] %v345
              $region60: #{comp_graph_conv.1} parent=54 // loop_footer
                %s312 = sadd.s32 1, %s308
              $region61: #{comp_graph_conv.1} parent=54 // loop_footer_branch
                %307 = sbr.rel target = $region57
              $region62: #{comp_graph_conv.1} parent=54 // loop_exit
                _
            $region55: #{comp_graph_conv.1} parent=50 // pred_fallthru
              _
            // Predicated region
            $region63: #{comp_graph_conv.1} parent=50 // pred_check
              _
            $region64: #{comp_graph_conv.1} parent=50 // pred_check_branch
              %348 = sbr.rel target = $region66
            $region65: #{comp_graph_conv.1} parent=50 // pred_region
              _
            $region66: #{comp_graph_conv.1} parent=50 // pred_fallthru
              _
          $region51: #{comp_graph_conv.1} parent=46 // pred_fallthru
            _
          %349 = vnop
        $region47: #{comp_graph_conv.1} parent=19 // pred_fallthru
          _
        // Predicated region
        $region67: #{comp_graph_conv.1} parent=19 // pred_check
          %p350 = pneg %p103
        $region68: #{comp_graph_conv.1} parent=19 // pred_check_branch
          %352 = sbr.rel (%p350) target = $region70
        $region69: #{comp_graph_conv.1} parent=19 // pred_region
          %s353 = smul.u32 32, %s23
          %p354 = scmp.lt.s32.totalorder %s353, 63
          %s355 = scalar_select %p354, %s353, 63
          %s356 = smul.addr %s355, 4
          %s357 = scalar_lea.vmem %s2, %s356
          %s358 = smul.u32 32, %s23
        $region70: #{comp_graph_conv.1} parent=19 // pred_fallthru
          _
        // Predicated region
        $region71: #{comp_graph_conv.1} parent=19 // pred_check
          %p359 = pneg %p129
        $region72: #{comp_graph_conv.1} parent=19 // pred_check_branch
          %361 = sbr.rel (%p359) target = $region74
        $region73: #{comp_graph_conv.1} parent=19 // pred_region
          %s362 = smul.u32 32, %s22
          %p363 = scmp.lt.s32.totalorder %s362, 63
          %s364 = scalar_select %p363, %s362, 63
          %s365 = smul.addr %s364, 8
          %s366 = scalar_lea.vmem %s3, %s365
          %s367 = smul.u32 32, %s22
        $region74: #{comp_graph_conv.1} parent=19 // pred_fallthru
          _
        // Predicated region
        $region75: #{comp_graph_conv.1} parent=19 // pred_check
          %p368 = pneg %p155
        $region76: #{comp_graph_conv.1} parent=19 // pred_check_branch
          %370 = sbr.rel (%p368) target = $region78
        $region77: #{comp_graph_conv.1} parent=19 // pred_region
          %s371 = smul.u32 32, %s22
          %p372 = scmp.lt.s32.totalorder %s371, 63
          %s373 = scalar_select %p372, %s371, 63
          %s374 = smul.addr %s373, 8
          %s375 = scalar_lea.vmem %s4, %s374
          %s376 = smul.u32 32, %s22
        $region78: #{comp_graph_conv.1} parent=19 // pred_fallthru
          _
      $region20: #{comp_graph_conv.1} parent=5 // pred_fallthru
        _
      %p377 = scmp.le.s32.totalorder 1, %s15
      %p378 = scmp.lt.s32.totalorder %s15, 5
      %p379 = pnand %p377, %p378
      %p380 = pneg %p379
      // Predicated region
      $region79: #{comp_graph_conv.1} parent=5 // pred_check
        _
      $region80: #{comp_graph_conv.1} parent=5 // pred_check_branch
        %382 = sbr.rel (%p379) target = $region82
      $region81: #{comp_graph_conv.1} parent=5 // pred_region
        %s383 = ssub.s32 %s15, 1
        %s384 = sand.u32 %s42, 1
        %s385 = sand.u32 %s42, 1
        %s386 = smul.addr %s385, 128
        %s387 = scalar_lea.vmem [#allocation3], %s386
        // Predicated region
        $region83: #{comp_graph_conv.1} parent=81 // pred_check
          %p388 = pneg %p55
        $region84: #{comp_graph_conv.1} parent=81 // pred_check_branch
          %390 = sbr.rel (%p388) target = $region86
        $region85: #{comp_graph_conv.1} parent=81 // pred_region
          _
        $region86: #{comp_graph_conv.1} parent=81 // pred_fallthru
          _
        %s391 = sand.u32 %s70, 1
        %s392 = sand.u32 %s70, 1
        %s393 = smul.addr %s392, 128
        %s394 = scalar_lea.vmem [#allocation4], %s393
        // Predicated region
        $region87: #{comp_graph_conv.1} parent=81 // pred_check
          %p395 = pneg %p83
        $region88: #{comp_graph_conv.1} parent=81 // pred_check_branch
          %397 = sbr.rel (%p395) target = $region90
        $region89: #{comp_graph_conv.1} parent=81 // pred_region
          _
        $region90: #{comp_graph_conv.1} parent=81 // pred_fallthru
          _
        %s398 = sand.u32 %s42, 1
        %s399 = sand.u32 %s42, 1
        %s400 = smul.addr %s399, 128
        %s401 = scalar_lea.vmem [#allocation3], %s400
        %p402 = pneg %p55
        %p403 = pneg %p52
        %s404 = sand.u32 %s70, 1
        %s405 = sand.u32 %s70, 1
        %s406 = smul.addr %s405, 128
        %s407 = scalar_lea.vmem [#allocation4], %s406
        %p408 = pneg %p83
        %p409 = pneg %p80
        %s410 = smul.u32 32, %s25
        %p411 = scmp.lt.s32.totalorder %s410, 63
        %s412 = scalar_select %p411, %s410, 63
        %s413 = smul.addr %s412, 4
        %s414 = scalar_lea.vmem %s2, %s413
        %p415 = pneg %p109
        %p416 = pneg %p106
        %s417 = smul.u32 32, %s24
        %p418 = scmp.lt.s32.totalorder %s417, 63
        %s419 = scalar_select %p418, %s417, 63
        %s420 = smul.addr %s419, 8
        %s421 = scalar_lea.vmem %s3, %s420
        %p422 = pneg %p135
        %p423 = pneg %p132
        %s424 = smul.u32 32, %s24
        %p425 = scmp.lt.s32.totalorder %s424, 63
        %s426 = scalar_select %p425, %s424, 63
        %s427 = smul.addr %s426, 8
        %s428 = scalar_lea.vmem %s4, %s427
        %p429 = pneg %p161
        %p430 = pneg %p158
        %p431 = pneg %p182
        %p432 = pneg %p179
        %p433 = pneg %p208
        %p434 = pneg %p205
        %s435 = sand.u32 %s195, 1
        %s436 = scalar_lea.sflag [#allocation6], %s435
        %s437 = sand.u32 %s195, 1
        %s438 = smul.addr %s437, 256
        %s439 = scalar_lea.vmem [#allocation5], %s438
        %s440 = smul.u32 8, %s24
        %s441 = smul.u32 2, %s25
        %s442 = smul.u32 8, %s25
        %s443 = smul.u32 2, %s24
        %s444 = smul.u32 32, %s25
        %p445 = scmp.lt.s32.totalorder %s444, 63
        %s446 = scalar_select %p445, %s444, 63
        %s447 = smul.addr %s446, 4
        %s448 = scalar_lea.vmem %s2, %s447
        %s449 = smul.u32 32, %s25
        %s450 = smul.u32 32, %s24
        %p451 = scmp.lt.s32.totalorder %s450, 63
        %s452 = scalar_select %p451, %s450, 63
        %s453 = smul.addr %s452, 8
        %s454 = scalar_lea.vmem %s3, %s453
        %s455 = smul.u32 32, %s24
        %s456 = smul.u32 32, %s24
        %p457 = scmp.lt.s32.totalorder %s456, 63
        %s458 = scalar_select %p457, %s456, 63
        %s459 = smul.addr %s458, 8
        %s460 = scalar_lea.vmem %s4, %s459
        %s461 = smul.u32 32, %s24
        %s462 = smul.u32 32, %s24
        %p464 = scmp.eq.s32.totalorder %s25, 0
        // Predicated region
        $region91: #{comp_graph_conv.1} parent=81 // pred_check
          %p465 = pneg %p464
        $region92: #{comp_graph_conv.1} parent=81 // pred_check_branch
          %467 = sbr.rel (%p465) target = $region94
        $region93: #{comp_graph_conv.1} parent=81 // pred_region
          %468 = vst [vmem:[#allocation2] sm:$0xff] 0.0
          %469 = vst [vmem:[#allocation2 + $0x8] sm:$0xff] 0.0
          %470 = vst [vmem:[#allocation2 + $0x10] sm:$0xff] 0.0
          %471 = vst [vmem:[#allocation2 + $0x18] sm:$0xff] 0.0
          %472 = vst [vmem:[#allocation2 + $0x20] sm:$0xff] 0.0
          %473 = vst [vmem:[#allocation2 + $0x28] sm:$0xff] 0.0
          %474 = vst [vmem:[#allocation2 + $0x30] sm:$0xff] 0.0
          %475 = vst [vmem:[#allocation2 + $0x38] sm:$0xff] 0.0
          %476 = vst [vmem:[#allocation2 + $0x40] sm:$0xff] 0.0
          %477 = vst [vmem:[#allocation2 + $0x48] sm:$0xff] 0.0
          %478 = vst [vmem:[#allocation2 + $0x50] sm:$0xff] 0.0
          %479 = vst [vmem:[#allocation2 + $0x58] sm:$0xff] 0.0
          %480 = vst [vmem:[#allocation2 + $0x60] sm:$0xff] 0.0
          %481 = vst [vmem:[#allocation2 + $0x68] sm:$0xff] 0.0
          %482 = vst [vmem:[#allocation2 + $0x70] sm:$0xff] 0.0
          %483 = vst [vmem:[#allocation2 + $0x78] sm:$0xff] 0.0
          %484 = vst [vmem:[#allocation2 + $0x80] sm:$0xff] 0.0
          %485 = vst [vmem:[#allocation2 + $0x88] sm:$0xff] 0.0
          %486 = vst [vmem:[#allocation2 + $0x90] sm:$0xff] 0.0
          %487 = vst [vmem:[#allocation2 + $0x98] sm:$0xff] 0.0
          %488 = vst [vmem:[#allocation2 + $0xa0] sm:$0xff] 0.0
          %489 = vst [vmem:[#allocation2 + $0xa8] sm:$0xff] 0.0
          %490 = vst [vmem:[#allocation2 + $0xb0] sm:$0xff] 0.0
          %491 = vst [vmem:[#allocation2 + $0xb8] sm:$0xff] 0.0
          %492 = vst [vmem:[#allocation2 + $0xc0] sm:$0xff] 0.0
          %493 = vst [vmem:[#allocation2 + $0xc8] sm:$0xff] 0.0
          %494 = vst [vmem:[#allocation2 + $0xd0] sm:$0xff] 0.0
          %495 = vst [vmem:[#allocation2 + $0xd8] sm:$0xff] 0.0
          %496 = vst [vmem:[#allocation2 + $0xe0] sm:$0xff] 0.0
          %497 = vst [vmem:[#allocation2 + $0xe8] sm:$0xff] 0.0
          %498 = vst [vmem:[#allocation2 + $0xf0] sm:$0xff] 0.0
          %499 = vst [vmem:[#allocation2 + $0xf8] sm:$0xff] 0.0
          %500 = vst [vmem:[#allocation2 + $0x100] sm:$0xff] 0.0
          %501 = vst [vmem:[#allocation2 + $0x108] sm:$0xff] 0.0
          %502 = vst [vmem:[#allocation2 + $0x110] sm:$0xff] 0.0
          %503 = vst [vmem:[#allocation2 + $0x118] sm:$0xff] 0.0
          %504 = vst [vmem:[#allocation2 + $0x120] sm:$0xff] 0.0
          %505 = vst [vmem:[#allocation2 + $0x128] sm:$0xff] 0.0
          %506 = vst [vmem:[#allocation2 + $0x130] sm:$0xff] 0.0
          %507 = vst [vmem:[#allocation2 + $0x138] sm:$0xff] 0.0
          %508 = vst [vmem:[#allocation2 + $0x140] sm:$0xff] 0.0
          %509 = vst [vmem:[#allocation2 + $0x148] sm:$0xff] 0.0
          %510 = vst [vmem:[#allocation2 + $0x150] sm:$0xff] 0.0
          %511 = vst [vmem:[#allocation2 + $0x158] sm:$0xff] 0.0
          %512 = vst [vmem:[#allocation2 + $0x160] sm:$0xff] 0.0
          %513 = vst [vmem:[#allocation2 + $0x168] sm:$0xff] 0.0
          %514 = vst [vmem:[#allocation2 + $0x170] sm:$0xff] 0.0
          %515 = vst [vmem:[#allocation2 + $0x178] sm:$0xff] 0.0
          %516 = vst [vmem:[#allocation2 + $0x180] sm:$0xff] 0.0
          %517 = vst [vmem:[#allocation2 + $0x188] sm:$0xff] 0.0
          %518 = vst [vmem:[#allocation2 + $0x190] sm:$0xff] 0.0
          %519 = vst [vmem:[#allocation2 + $0x198] sm:$0xff] 0.0
          %520 = vst [vmem:[#allocation2 + $0x1a0] sm:$0xff] 0.0
          %521 = vst [vmem:[#allocation2 + $0x1a8] sm:$0xff] 0.0
          %522 = vst [vmem:[#allocation2 + $0x1b0] sm:$0xff] 0.0
          %523 = vst [vmem:[#allocation2 + $0x1b8] sm:$0xff] 0.0
          %524 = vst [vmem:[#allocation2 + $0x1c0] sm:$0xff] 0.0
          %525 = vst [vmem:[#allocation2 + $0x1c8] sm:$0xff] 0.0
          %526 = vst [vmem:[#allocation2 + $0x1d0] sm:$0xff] 0.0
          %527 = vst [vmem:[#allocation2 + $0x1d8] sm:$0xff] 0.0
          %528 = vst [vmem:[#allocation2 + $0x1e0] sm:$0xff] 0.0
          %529 = vst [vmem:[#allocation2 + $0x1e8] sm:$0xff] 0.0
          %530 = vst [vmem:[#allocation2 + $0x1f0] sm:$0xff] 0.0
          %531 = vst [vmem:[#allocation2 + $0x1f8] sm:$0xff] 0.0
          %532 = vst [vmem:[#allocation2 + $0x200] sm:$0xff] 0.0
          %533 = vst [vmem:[#allocation2 + $0x208] sm:$0xff] 0.0
          %534 = vst [vmem:[#allocation2 + $0x210] sm:$0xff] 0.0
          %535 = vst [vmem:[#allocation2 + $0x218] sm:$0xff] 0.0
          %536 = vst [vmem:[#allocation2 + $0x220] sm:$0xff] 0.0
          %537 = vst [vmem:[#allocation2 + $0x228] sm:$0xff] 0.0
          %538 = vst [vmem:[#allocation2 + $0x230] sm:$0xff] 0.0
          %539 = vst [vmem:[#allocation2 + $0x238] sm:$0xff] 0.0
          %540 = vst [vmem:[#allocation2 + $0x240] sm:$0xff] 0.0
          %541 = vst [vmem:[#allocation2 + $0x248] sm:$0xff] 0.0
          %542 = vst [vmem:[#allocation2 + $0x250] sm:$0xff] 0.0
          %543 = vst [vmem:[#allocation2 + $0x258] sm:$0xff] 0.0
          %544 = vst [vmem:[#allocation2 + $0x260] sm:$0xff] 0.0
          %545 = vst [vmem:[#allocation2 + $0x268] sm:$0xff] 0.0
          %546 = vst [vmem:[#allocation2 + $0x270] sm:$0xff] 0.0
          %547 = vst [vmem:[#allocation2 + $0x278] sm:$0xff] 0.0
          %548 = vst [vmem:[#allocation2 + $0x280] sm:$0xff] 0.0
          %549 = vst [vmem:[#allocation2 + $0x288] sm:$0xff] 0.0
          %550 = vst [vmem:[#allocation2 + $0x290] sm:$0xff] 0.0
          %551 = vst [vmem:[#allocation2 + $0x298] sm:$0xff] 0.0
          %552 = vst [vmem:[#allocation2 + $0x2a0] sm:$0xff] 0.0
          %553 = vst [vmem:[#allocation2 + $0x2a8] sm:$0xff] 0.0
          %554 = vst [vmem:[#allocation2 + $0x2b0] sm:$0xff] 0.0
          %555 = vst [vmem:[#allocation2 + $0x2b8] sm:$0xff] 0.0
          %556 = vst [vmem:[#allocation2 + $0x2c0] sm:$0xff] 0.0
          %557 = vst [vmem:[#allocation2 + $0x2c8] sm:$0xff] 0.0
          %558 = vst [vmem:[#allocation2 + $0x2d0] sm:$0xff] 0.0
          %559 = vst [vmem:[#allocation2 + $0x2d8] sm:$0xff] 0.0
          %560 = vst [vmem:[#allocation2 + $0x2e0] sm:$0xff] 0.0
          %561 = vst [vmem:[#allocation2 + $0x2e8] sm:$0xff] 0.0
          %562 = vst [vmem:[#allocation2 + $0x2f0] sm:$0xff] 0.0
          %563 = vst [vmem:[#allocation2 + $0x2f8] sm:$0xff] 0.0
        $region94: #{comp_graph_conv.1} parent=81 // pred_fallthru
          _
        %v564 = vld [vmem:[%s448] sm:$0xf]
        %v565 = vld [vmem:[%s448 + $0x4] sm:$0xf]
        %v566 = vld [vmem:[%s448 + $0x8] sm:$0xf]
        %v567 = vld [vmem:[%s448 + $0xc] sm:$0xf]
        %v568 = vld [vmem:[%s448 + $0x10] sm:$0xf]
        %v569 = vld [vmem:[%s448 + $0x14] sm:$0xf]
        %v570 = vld [vmem:[%s448 + $0x18] sm:$0xf]
        %v571 = vld [vmem:[%s448 + $0x1c] sm:$0xf]
        %v572 = vld [vmem:[%s448 + $0x20] sm:$0xf]
        %v573 = vld [vmem:[%s448 + $0x24] sm:$0xf]
        %v574 = vld [vmem:[%s448 + $0x28] sm:$0xf]
        %v575 = vld [vmem:[%s448 + $0x2c] sm:$0xf]
        %v576 = vld [vmem:[%s448 + $0x30] sm:$0xf]
        %v577 = vld [vmem:[%s448 + $0x34] sm:$0xf]
        %v578 = vld [vmem:[%s448 + $0x38] sm:$0xf]
        %v579 = vld [vmem:[%s448 + $0x3c] sm:$0xf]
        %v580 = vld [vmem:[%s448 + $0x40] sm:$0xf]
        %v581 = vld [vmem:[%s448 + $0x44] sm:$0xf]
        %v582 = vld [vmem:[%s448 + $0x48] sm:$0xf]
        %v583 = vld [vmem:[%s448 + $0x4c] sm:$0xf]
        %v584 = vld [vmem:[%s448 + $0x50] sm:$0xf]
        %v585 = vld [vmem:[%s448 + $0x54] sm:$0xf]
        %v586 = vld [vmem:[%s448 + $0x58] sm:$0xf]
        %v587 = vld [vmem:[%s448 + $0x5c] sm:$0xf]
        %v588 = vld [vmem:[%s448 + $0x60] sm:$0xf]
        %v589 = vld [vmem:[%s448 + $0x64] sm:$0xf]
        %v590 = vld [vmem:[%s448 + $0x68] sm:$0xf]
        %v591 = vld [vmem:[%s448 + $0x6c] sm:$0xf]
        %v592 = vld [vmem:[%s448 + $0x70] sm:$0xf]
        %v593 = vld [vmem:[%s448 + $0x74] sm:$0xf]
        %v594 = vld [vmem:[%s448 + $0x78] sm:$0xf]
        %v595 = vld [vmem:[%s448 + $0x7c] sm:$0xf]
        %v596 = vld [vmem:[%s387] sm:$0xff]
        %v597 = vld [vmem:[%s387 + $0x8] sm:$0xff]
        %v598 = vld [vmem:[%s387 + $0x10] sm:$0xff]
        %v599 = vld [vmem:[%s387 + $0x18] sm:$0xff]
        %v600 = vld [vmem:[%s387 + $0x20] sm:$0xff]
        %v601 = vld [vmem:[%s387 + $0x28] sm:$0xff]
        %v602 = vld [vmem:[%s387 + $0x30] sm:$0xff]
        %v603 = vld [vmem:[%s387 + $0x38] sm:$0xff]
        %v604 = vld [vmem:[%s387 + $0x40] sm:$0xff]
        %v605 = vld [vmem:[%s387 + $0x48] sm:$0xff]
        %v606 = vld [vmem:[%s387 + $0x50] sm:$0xff]
        %v607 = vld [vmem:[%s387 + $0x58] sm:$0xff]
        %v608 = vld [vmem:[%s387 + $0x60] sm:$0xff]
        %v609 = vld [vmem:[%s387 + $0x68] sm:$0xff]
        %v610 = vld [vmem:[%s387 + $0x70] sm:$0xff]
        %v611 = vld [vmem:[%s387 + $0x78] sm:$0xff]
        %v612 = vunpack.c.l.s8.bf16 %v596
        %v613 = vunpack.c.l.s8.bf16 %v597
        %v614 = vunpack.c.h.s8.bf16 %v596
        %v615 = vunpack.c.h.s8.bf16 %v597
        %v616 = vunpack.c.l.s8.bf16 %v598
        %v617 = vunpack.c.l.s8.bf16 %v599
        %v618 = vunpack.c.h.s8.bf16 %v598
        %v619 = vunpack.c.h.s8.bf16 %v599
        %v620 = vunpack.c.l.s8.bf16 %v600
        %v621 = vunpack.c.l.s8.bf16 %v601
        %v622 = vunpack.c.h.s8.bf16 %v600
        %v623 = vunpack.c.h.s8.bf16 %v601
        %v624 = vunpack.c.l.s8.bf16 %v602
        %v625 = vunpack.c.l.s8.bf16 %v603
        %v626 = vunpack.c.h.s8.bf16 %v602
        %v627 = vunpack.c.h.s8.bf16 %v603
        %v628 = vunpack.c.l.s8.bf16 %v604
        %v629 = vunpack.c.l.s8.bf16 %v605
        %v630 = vunpack.c.h.s8.bf16 %v604
        %v631 = vunpack.c.h.s8.bf16 %v605
        %v632 = vunpack.c.l.s8.bf16 %v606
        %v633 = vunpack.c.l.s8.bf16 %v607
        %v634 = vunpack.c.h.s8.bf16 %v606
        %v635 = vunpack.c.h.s8.bf16 %v607
        %v636 = vunpack.c.l.s8.bf16 %v608
        %v637 = vunpack.c.l.s8.bf16 %v609
        %v638 = vunpack.c.h.s8.bf16 %v608
        %v639 = vunpack.c.h.s8.bf16 %v609
        %v640 = vunpack.c.l.s8.bf16 %v610
        %v641 = vunpack.c.l.s8.bf16 %v611
        %v642 = vunpack.c.h.s8.bf16 %v610
        %v643 = vunpack.c.h.s8.bf16 %v611
        %v644 = vld [vmem:[%s394] sm:$0xff]
        %v645 = vld [vmem:[%s394 + $0x8] sm:$0xff]
        %v646 = vld [vmem:[%s394 + $0x10] sm:$0xff]
        %v647 = vld [vmem:[%s394 + $0x18] sm:$0xff]
        %v648 = vld [vmem:[%s394 + $0x20] sm:$0xff]
        %v649 = vld [vmem:[%s394 + $0x28] sm:$0xff]
        %v650 = vld [vmem:[%s394 + $0x30] sm:$0xff]
        %v651 = vld [vmem:[%s394 + $0x38] sm:$0xff]
        %v652 = vld [vmem:[%s394 + $0x40] sm:$0xff]
        %v653 = vld [vmem:[%s394 + $0x48] sm:$0xff]
        %v654 = vld [vmem:[%s394 + $0x50] sm:$0xff]
        %v655 = vld [vmem:[%s394 + $0x58] sm:$0xff]
        %v656 = vld [vmem:[%s394 + $0x60] sm:$0xff]
        %v657 = vld [vmem:[%s394 + $0x68] sm:$0xff]
        %v658 = vld [vmem:[%s394 + $0x70] sm:$0xff]
        %v659 = vld [vmem:[%s394 + $0x78] sm:$0xff]
        %v660 = vunpack.c.l.s8.bf16 %v644
        %v661 = vunpack.c.l.s8.bf16 %v645
        %v662 = vunpack.c.h.s8.bf16 %v644
        %v663 = vunpack.c.h.s8.bf16 %v645
        %v664 = vunpack.c.l.s8.bf16 %v646
        %v665 = vunpack.c.l.s8.bf16 %v647
        %v666 = vunpack.c.h.s8.bf16 %v646
        %v667 = vunpack.c.h.s8.bf16 %v647
        %v668 = vunpack.c.l.s8.bf16 %v648
        %v669 = vunpack.c.l.s8.bf16 %v649
        %v670 = vunpack.c.h.s8.bf16 %v648
        %v671 = vunpack.c.h.s8.bf16 %v649
        %v672 = vunpack.c.l.s8.bf16 %v650
        %v673 = vunpack.c.l.s8.bf16 %v651
        %v674 = vunpack.c.h.s8.bf16 %v650
        %v675 = vunpack.c.h.s8.bf16 %v651
        %v676 = vunpack.c.l.s8.bf16 %v652
        %v677 = vunpack.c.l.s8.bf16 %v653
        %v678 = vunpack.c.h.s8.bf16 %v652
        %v679 = vunpack.c.h.s8.bf16 %v653
        %v680 = vunpack.c.l.s8.bf16 %v654
        %v681 = vunpack.c.l.s8.bf16 %v655
        %v682 = vunpack.c.h.s8.bf16 %v654
        %v683 = vunpack.c.h.s8.bf16 %v655
        %v684 = vunpack.c.l.s8.bf16 %v656
        %v685 = vunpack.c.l.s8.bf16 %v657
        %v686 = vunpack.c.h.s8.bf16 %v656
        %v687 = vunpack.c.h.s8.bf16 %v657
        %v688 = vunpack.c.l.s8.bf16 %v658
        %v689 = vunpack.c.l.s8.bf16 %v659
        %v690 = vunpack.c.h.s8.bf16 %v658
        %v691 = vunpack.c.h.s8.bf16 %v659
        %v692 = vld [vmem:[#allocation2 + $0x8] sm:$0xff]
        %v693 = vld [vmem:[#allocation2 + $0x20] sm:$0xff]
        %v694 = vld [vmem:[#allocation2 + $0x38] sm:$0xff]
        %v695 = vld [vmem:[#allocation2 + $0x50] sm:$0xff]
        %v696 = vld [vmem:[#allocation2 + $0x68] sm:$0xff]
        %v697 = vld [vmem:[#allocation2 + $0x80] sm:$0xff]
        %v698 = vld [vmem:[#allocation2 + $0x98] sm:$0xff]
        %v699 = vld [vmem:[#allocation2 + $0xb0] sm:$0xff]
        %v700 = vld [vmem:[#allocation2 + $0xc8] sm:$0xff]
        %v701 = vld [vmem:[#allocation2 + $0xe0] sm:$0xff]
        %v702 = vld [vmem:[#allocation2 + $0xf8] sm:$0xff]
        %v703 = vld [vmem:[#allocation2 + $0x110] sm:$0xff]
        %v704 = vld [vmem:[#allocation2 + $0x128] sm:$0xff]
        %v705 = vld [vmem:[#allocation2 + $0x140] sm:$0xff]
        %v706 = vld [vmem:[#allocation2 + $0x158] sm:$0xff]
        %v707 = vld [vmem:[#allocation2 + $0x170] sm:$0xff]
        %v708 = vld [vmem:[#allocation2 + $0x188] sm:$0xff]
        %v709 = vld [vmem:[#allocation2 + $0x1a0] sm:$0xff]
        %v710 = vld [vmem:[#allocation2 + $0x1b8] sm:$0xff]
        %v711 = vld [vmem:[#allocation2 + $0x1d0] sm:$0xff]
        %v712 = vld [vmem:[#allocation2 + $0x1e8] sm:$0xff]
        %v713 = vld [vmem:[#allocation2 + $0x200] sm:$0xff]
        %v714 = vld [vmem:[#allocation2 + $0x218] sm:$0xff]
        %v715 = vld [vmem:[#allocation2 + $0x230] sm:$0xff]
        %v716 = vld [vmem:[#allocation2 + $0x248] sm:$0xff]
        %v717 = vld [vmem:[#allocation2 + $0x260] sm:$0xff]
        %v718 = vld [vmem:[#allocation2 + $0x278] sm:$0xff]
        %v719 = vld [vmem:[#allocation2 + $0x290] sm:$0xff]
        %v720 = vld [vmem:[#allocation2 + $0x2a8] sm:$0xff]
        %v721 = vld [vmem:[#allocation2 + $0x2c0] sm:$0xff]
        %v722 = vld [vmem:[#allocation2 + $0x2d8] sm:$0xff]
        %v723 = vld [vmem:[#allocation2 + $0x2f0] sm:$0xff]
        %v756 = vunpack.c.l.b16 %v564
        %v757 = vunpack.c.l.b16 %v565
        %v758 = vunpack.c.l.b16 %v566
        %v759 = vunpack.c.l.b16 %v567
        %v760 = vunpack.c.l.b16 %v568
        %v761 = vunpack.c.l.b16 %v569
        %v762 = vunpack.c.l.b16 %v570
        %v763 = vunpack.c.l.b16 %v571
        %v764 = vunpack.c.l.b16 %v572
        %v765 = vunpack.c.l.b16 %v573
        %v766 = vunpack.c.l.b16 %v574
        %v767 = vunpack.c.l.b16 %v575
        %v768 = vunpack.c.l.b16 %v576
        %v769 = vunpack.c.l.b16 %v577
        %v770 = vunpack.c.l.b16 %v578
        %v771 = vunpack.c.l.b16 %v579
        %v772 = vunpack.c.l.b16 %v580
        %v773 = vunpack.c.l.b16 %v581
        %v774 = vunpack.c.l.b16 %v582
        %v775 = vunpack.c.l.b16 %v583
        %v776 = vunpack.c.l.b16 %v584
        %v777 = vunpack.c.l.b16 %v585
        %v778 = vunpack.c.l.b16 %v586
        %v779 = vunpack.c.l.b16 %v587
        %v780 = vunpack.c.l.b16 %v588
        %v781 = vunpack.c.l.b16 %v589
        %v782 = vunpack.c.l.b16 %v590
        %v783 = vunpack.c.l.b16 %v591
        %v784 = vunpack.c.l.b16 %v592
        %v785 = vunpack.c.l.b16 %v593
        %v786 = vunpack.c.l.b16 %v594
        %v787 = vunpack.c.l.b16 %v595
        %v788 = vpack.c.b16 %v757, %v756
        %v789 = vpack.c.b16 %v759, %v758
        %v790 = vpack.c.b16 %v761, %v760
        %v791 = vpack.c.b16 %v763, %v762
        %v792 = vpack.c.b16 %v765, %v764
        %v793 = vpack.c.b16 %v767, %v766
        %v794 = vpack.c.b16 %v769, %v768
        %v795 = vpack.c.b16 %v771, %v770
        %v796 = vpack.c.b16 %v773, %v772
        %v797 = vpack.c.b16 %v775, %v774
        %v798 = vpack.c.b16 %v777, %v776
        %v799 = vpack.c.b16 %v779, %v778
        %v800 = vpack.c.b16 %v781, %v780
        %v801 = vpack.c.b16 %v783, %v782
        %v802 = vpack.c.b16 %v785, %v784
        %v803 = vpack.c.b16 %v787, %v786
        %820 = vmatprep.subr.bf16.mxu0 0
        %821 = vmatpush1.bf16.msra.mxu0 %v788
        %822 = vmatprep.subr.bf16.mxu0 0
        %823 = vmatpush1.bf16.msra.mxu0 %v789
        %824 = vmatprep.subr.bf16.mxu0 0
        %825 = vmatpush1.bf16.msra.mxu0 %v790
        %826 = vmatprep.subr.bf16.mxu0 0
        %827 = vmatpush1.bf16.msra.mxu0 %v791
        %828 = vmatprep.subr.bf16.mxu0 0
        %829 = vmatpush1.bf16.msra.mxu0 %v792
        %830 = vmatprep.subr.bf16.mxu0 0
        %831 = vmatpush1.bf16.msra.mxu0 %v793
        %832 = vmatprep.subr.bf16.mxu0 0
        %833 = vmatpush1.bf16.msra.mxu0 %v794
        %834 = vmatprep.subr.bf16.mxu0 0
        %835 = vmatpush1.bf16.msra.mxu0 %v795
        %836 = vmatprep.subr.bf16.mxu0 0
        %837 = vmatpush1.bf16.msra.mxu0 %v796
        %838 = vmatprep.subr.bf16.mxu0 0
        %839 = vmatpush1.bf16.msra.mxu0 %v797
        %840 = vmatprep.subr.bf16.mxu0 0
        %841 = vmatpush1.bf16.msra.mxu0 %v798
        %842 = vmatprep.subr.bf16.mxu0 0
        %843 = vmatpush1.bf16.msra.mxu0 %v799
        %844 = vmatprep.subr.bf16.mxu0 0
        %845 = vmatpush1.bf16.msra.mxu0 %v800
        %846 = vmatprep.subr.bf16.mxu0 0
        %847 = vmatpush1.bf16.msra.mxu0 %v801
        %848 = vmatprep.subr.bf16.mxu0 0
        %849 = vmatpush1.bf16.msra.mxu0 %v802
        %850 = vmatprep.subr.bf16.mxu0 0
        %851 = vmatpush1.bf16.msra.mxu0 %v803
        %852 = vmatprep.mubr.bf16.mxu0 %v613
        %853 = vmatmul.mubr.bf16.gmra.mrb[0].mxu0 %v612
        %v854 = vpop.f32.mrb[0].mxu0
        %v855 = vadd.f32 0.0, %v854
        %v856 = vpop.f32.mrb[0].mxu0
        %v857 = vpop.f32.mrb[0].mxu0
        %v858 = vadd.f32 0.0, %v857
        %v859 = vpop.f32.mrb[0].mxu0
        %860 = vmatprep.mubr.bf16.mxu0 %v615
        %861 = vmatmul.mubr.bf16.gmra.mrb[0].mxu0 %v614
        %v862 = vpop.f32.mrb[0].mxu0
        %v863 = vadd.f32 0.0, %v862
        %v864 = vpop.f32.mrb[0].mxu0
        %v865 = vpop.f32.mrb[0].mxu0
        %v866 = vadd.f32 0.0, %v865
        %v867 = vpop.f32.mrb[0].mxu0
        %868 = vmatprep.mubr.bf16.mxu0 %v617
        %869 = vmatmul.mubr.bf16.gmra.mrb[0].mxu0 %v616
        %v870 = vpop.f32.mrb[0].mxu0
        %v871 = vadd.f32 0.0, %v870
        %v872 = vpop.f32.mrb[0].mxu0
        %v873 = vpop.f32.mrb[0].mxu0
        %v874 = vadd.f32 0.0, %v873
        %v875 = vpop.f32.mrb[0].mxu0
        %876 = vmatprep.mubr.bf16.mxu0 %v619
        %877 = vmatmul.mubr.bf16.gmra.mrb[0].mxu0 %v618
        %v878 = vpop.f32.mrb[0].mxu0
        %v879 = vadd.f32 0.0, %v878
        %v880 = vpop.f32.mrb[0].mxu0
        %v881 = vpop.f32.mrb[0].mxu0
        %v882 = vadd.f32 0.0, %v881
        %v883 = vpop.f32.mrb[0].mxu0
        %884 = vmatprep.mubr.bf16.mxu0 %v621
        %885 = vmatmul.mubr.bf16.gmra.mrb[0].mxu0 %v620
        %v886 = vpop.f32.mrb[0].mxu0
        %v887 = vadd.f32 0.0, %v886
        %v888 = vpop.f32.mrb[0].mxu0
        %v889 = vpop.f32.mrb[0].mxu0
        %v890 = vadd.f32 0.0, %v889
        %v891 = vpop.f32.mrb[0].mxu0
        %892 = vmatprep.mubr.bf16.mxu0 %v623
        %893 = vmatmul.mubr.bf16.gmra.mrb[0].mxu0 %v622
        %v894 = vpop.f32.mrb[0].mxu0
        %v895 = vadd.f32 0.0, %v894
        %v896 = vpop.f32.mrb[0].mxu0
        %v897 = vpop.f32.mrb[0].mxu0
        %v898 = vadd.f32 0.0, %v897
        %v899 = vpop.f32.mrb[0].mxu0
        %900 = vmatprep.mubr.bf16.mxu0 %v625
        %901 = vmatmul.mubr.bf16.gmra.mrb[0].mxu0 %v624
        %v902 = vpop.f32.mrb[0].mxu0
        %v903 = vadd.f32 0.0, %v902
        %v904 = vpop.f32.mrb[0].mxu0
        %v905 = vpop.f32.mrb[0].mxu0
        %v906 = vadd.f32 0.0, %v905
        %v907 = vpop.f32.mrb[0].mxu0
        %908 = vmatprep.mubr.bf16.mxu0 %v627
        %909 = vmatmul.mubr.bf16.gmra.mrb[0].mxu0 %v626
        %v910 = vpop.f32.mrb[0].mxu0
        %v911 = vadd.f32 0.0, %v910
        %v912 = vpop.f32.mrb[0].mxu0
        %v913 = vpop.f32.mrb[0].mxu0
        %v914 = vadd.f32 0.0, %v913
        %v915 = vpop.f32.mrb[0].mxu0
        %916 = vmatprep.mubr.bf16.mxu0 %v629
        %917 = vmatmul.mubr.bf16.gmra.mrb[0].mxu0 %v628
        %v918 = vpop.f32.mrb[0].mxu0
        %v919 = vadd.f32 0.0, %v918
        %v920 = vpop.f32.mrb[0].mxu0
        %v921 = vpop.f32.mrb[0].mxu0
        %v922 = vadd.f32 0.0, %v921
        %v923 = vpop.f32.mrb[0].mxu0
        %924 = vmatprep.mubr.bf16.mxu0 %v631
        %925 = vmatmul.mubr.bf16.gmra.mrb[0].mxu0 %v630
        %v926 = vpop.f32.mrb[0].mxu0
        %v927 = vadd.f32 0.0, %v926
        %v928 = vpop.f32.mrb[0].mxu0
        %v929 = vpop.f32.mrb[0].mxu0
        %v930 = vadd.f32 0.0, %v929
        %v931 = vpop.f32.mrb[0].mxu0
        %932 = vmatprep.mubr.bf16.mxu0 %v633
        %933 = vmatmul.mubr.bf16.gmra.mrb[0].mxu0 %v632
        %v934 = vpop.f32.mrb[0].mxu0
        %v935 = vadd.f32 0.0, %v934
        %v936 = vpop.f32.mrb[0].mxu0
        %v937 = vpop.f32.mrb[0].mxu0
        %v938 = vadd.f32 0.0, %v937
        %v939 = vpop.f32.mrb[0].mxu0
        %940 = vmatprep.mubr.bf16.mxu0 %v635
        %941 = vmatmul.mubr.bf16.gmra.mrb[0].mxu0 %v634
        %v942 = vpop.f32.mrb[0].mxu0
        %v943 = vadd.f32 0.0, %v942
        %v944 = vpop.f32.mrb[0].mxu0
        %v945 = vpop.f32.mrb[0].mxu0
        %v946 = vadd.f32 0.0, %v945
        %v947 = vpop.f32.mrb[0].mxu0
        %948 = vmatprep.mubr.bf16.mxu0 %v637
        %949 = vmatmul.mubr.bf16.gmra.mrb[0].mxu0 %v636
        %v950 = vpop.f32.mrb[0].mxu0
        %v951 = vadd.f32 0.0, %v950
        %v952 = vpop.f32.mrb[0].mxu0
        %v953 = vpop.f32.mrb[0].mxu0
        %v954 = vadd.f32 0.0, %v953
        %v955 = vpop.f32.mrb[0].mxu0
        %956 = vmatprep.mubr.bf16.mxu0 %v639
        %957 = vmatmul.mubr.bf16.gmra.mrb[0].mxu0 %v638
        %v958 = vpop.f32.mrb[0].mxu0
        %v959 = vadd.f32 0.0, %v958
        %v960 = vpop.f32.mrb[0].mxu0
        %v961 = vpop.f32.mrb[0].mxu0
        %v962 = vadd.f32 0.0, %v961
        %v963 = vpop.f32.mrb[0].mxu0
        %964 = vmatprep.mubr.bf16.mxu0 %v641
        %965 = vmatmul.mubr.bf16.gmra.mrb[0].mxu0 %v640
        %v966 = vpop.f32.mrb[0].mxu0
        %v967 = vadd.f32 0.0, %v966
        %v968 = vpop.f32.mrb[0].mxu0
        %v969 = vpop.f32.mrb[0].mxu0
        %v970 = vadd.f32 0.0, %v969
        %v971 = vpop.f32.mrb[0].mxu0
        %972 = vmatprep.mubr.bf16.mxu0 %v643
        %973 = vmatmul.mubr.bf16.gmra.mrb[0].mxu0 %v642
        %v974 = vpop.f32.mrb[0].mxu0
        %v975 = vadd.f32 0.0, %v974
        %v976 = vpop.f32.mrb[0].mxu0
        %v977 = vpop.f32.mrb[0].mxu0
        %v978 = vadd.f32 0.0, %v977
        %v979 = vpop.f32.mrb[0].mxu0
        %980 = vdwg.mxu0
        %v981 = vadd.f32 %v692, %v855
        %v982 = vadd.f32 %v693, %v858
        %v983 = vadd.f32 %v694, %v863
        %v984 = vadd.f32 %v695, %v866
        %v985 = vadd.f32 %v696, %v871
        %v986 = vadd.f32 %v697, %v874
        %v987 = vadd.f32 %v698, %v879
        %v988 = vadd.f32 %v699, %v882
        %v989 = vadd.f32 %v700, %v887
        %v990 = vadd.f32 %v701, %v890
        %v991 = vadd.f32 %v702, %v895
        %v992 = vadd.f32 %v703, %v898
        %v993 = vadd.f32 %v704, %v903
        %v994 = vadd.f32 %v705, %v906
        %v995 = vadd.f32 %v706, %v911
        %v996 = vadd.f32 %v707, %v914
        %v997 = vadd.f32 %v708, %v919
        %v998 = vadd.f32 %v709, %v922
        %v999 = vadd.f32 %v710, %v927
        %v1000 = vadd.f32 %v711, %v930
        %v1001 = vadd.f32 %v712, %v935
        %v1002 = vadd.f32 %v713, %v938
        %v1003 = vadd.f32 %v714, %v943
        %v1004 = vadd.f32 %v715, %v946
        %v1005 = vadd.f32 %v716, %v951
        %v1006 = vadd.f32 %v717, %v954
        %v1007 = vadd.f32 %v718, %v959
        %v1008 = vadd.f32 %v719, %v962
        %v1009 = vadd.f32 %v720, %v967
        %v1010 = vadd.f32 %v721, %v970
        %v1011 = vadd.f32 %v722, %v975
        %v1012 = vadd.f32 %v723, %v978
        %1013 = vst [vmem:[#allocation2 + $0x8] sm:$0xff] %v981
        %1014 = vst [vmem:[#allocation2 + $0x20] sm:$0xff] %v982
        %1015 = vst [vmem:[#allocation2 + $0x38] sm:$0xff] %v983
        %1016 = vst [vmem:[#allocation2 + $0x50] sm:$0xff] %v984
        %1017 = vst [vmem:[#allocation2 + $0x68] sm:$0xff] %v985
        %1018 = vst [vmem:[#allocation2 + $0x80] sm:$0xff] %v986
        %1019 = vst [vmem:[#allocation2 + $0x98] sm:$0xff] %v987
        %1020 = vst [vmem:[#allocation2 + $0xb0] sm:$0xff] %v988
        %1021 = vst [vmem:[#allocation2 + $0xc8] sm:$0xff] %v989
        %1022 = vst [vmem:[#allocation2 + $0xe0] sm:$0xff] %v990
        %1023 = vst [vmem:[#allocation2 + $0xf8] sm:$0xff] %v991
        %1024 = vst [vmem:[#allocation2 + $0x110] sm:$0xff] %v992
        %1025 = vst [vmem:[#allocation2 + $0x128] sm:$0xff] %v993
        %1026 = vst [vmem:[#allocation2 + $0x140] sm:$0xff] %v994
        %1027 = vst [vmem:[#allocation2 + $0x158] sm:$0xff] %v995
        %1028 = vst [vmem:[#allocation2 + $0x170] sm:$0xff] %v996
        %1029 = vst [vmem:[#allocation2 + $0x188] sm:$0xff] %v997
        %1030 = vst [vmem:[#allocation2 + $0x1a0] sm:$0xff] %v998
        %1031 = vst [vmem:[#allocation2 + $0x1b8] sm:$0xff] %v999
        %1032 = vst [vmem:[#allocation2 + $0x1d0] sm:$0xff] %v1000
        %1033 = vst [vmem:[#allocation2 + $0x1e8] sm:$0xff] %v1001
        %1034 = vst [vmem:[#allocation2 + $0x200] sm:$0xff] %v1002
        %1035 = vst [vmem:[#allocation2 + $0x218] sm:$0xff] %v1003
        %1036 = vst [vmem:[#allocation2 + $0x230] sm:$0xff] %v1004
        %1037 = vst [vmem:[#allocation2 + $0x248] sm:$0xff] %v1005
        %1038 = vst [vmem:[#allocation2 + $0x260] sm:$0xff] %v1006
        %1039 = vst [vmem:[#allocation2 + $0x278] sm:$0xff] %v1007
        %1040 = vst [vmem:[#allocation2 + $0x290] sm:$0xff] %v1008
        %1041 = vst [vmem:[#allocation2 + $0x2a8] sm:$0xff] %v1009
        %1042 = vst [vmem:[#allocation2 + $0x2c0] sm:$0xff] %v1010
        %1043 = vst [vmem:[#allocation2 + $0x2d8] sm:$0xff] %v1011
        %1044 = vst [vmem:[#allocation2 + $0x2f0] sm:$0xff] %v1012
        %v1045 = vld [vmem:[#allocation2 + $0x10] sm:$0xff]
        %v1046 = vld [vmem:[#allocation2 + $0x28] sm:$0xff]
        %v1047 = vld [vmem:[#allocation2 + $0x40] sm:$0xff]
        %v1048 = vld [vmem:[#allocation2 + $0x58] sm:$0xff]
        %v1049 = vld [vmem:[#allocation2 + $0x70] sm:$0xff]
        %v1050 = vld [vmem:[#allocation2 + $0x88] sm:$0xff]
        %v1051 = vld [vmem:[#allocation2 + $0xa0] sm:$0xff]
        %v1052 = vld [vmem:[#allocation2 + $0xb8] sm:$0xff]
        %v1053 = vld [vmem:[#allocation2 + $0xd0] sm:$0xff]
        %v1054 = vld [vmem:[#allocation2 + $0xe8] sm:$0xff]
        %v1055 = vld [vmem:[#allocation2 + $0x100] sm:$0xff]
        %v1056 = vld [vmem:[#allocation2 + $0x118] sm:$0xff]
        %v1057 = vld [vmem:[#allocation2 + $0x130] sm:$0xff]
        %v1058 = vld [vmem:[#allocation2 + $0x148] sm:$0xff]
        %v1059 = vld [vmem:[#allocation2 + $0x160] sm:$0xff]
        %v1060 = vld [vmem:[#allocation2 + $0x178] sm:$0xff]
        %v1061 = vld [vmem:[#allocation2 + $0x190] sm:$0xff]
        %v1062 = vld [vmem:[#allocation2 + $0x1a8] sm:$0xff]
        %v1063 = vld [vmem:[#allocation2 + $0x1c0] sm:$0xff]
        %v1064 = vld [vmem:[#allocation2 + $0x1d8] sm:$0xff]
        %v1065 = vld [vmem:[#allocation2 + $0x1f0] sm:$0xff]
        %v1066 = vld [vmem:[#allocation2 + $0x208] sm:$0xff]
        %v1067 = vld [vmem:[#allocation2 + $0x220] sm:$0xff]
        %v1068 = vld [vmem:[#allocation2 + $0x238] sm:$0xff]
        %v1069 = vld [vmem:[#allocation2 + $0x250] sm:$0xff]
        %v1070 = vld [vmem:[#allocation2 + $0x268] sm:$0xff]
        %v1071 = vld [vmem:[#allocation2 + $0x280] sm:$0xff]
        %v1072 = vld [vmem:[#allocation2 + $0x298] sm:$0xff]
        %v1073 = vld [vmem:[#allocation2 + $0x2b0] sm:$0xff]
        %v1074 = vld [vmem:[#allocation2 + $0x2c8] sm:$0xff]
        %v1075 = vld [vmem:[#allocation2 + $0x2e0] sm:$0xff]
        %v1076 = vld [vmem:[#allocation2 + $0x2f8] sm:$0xff]
        %1077 = vxpose.xlu0.c.b16.start [1/8] %v660, 128
        %1078 = vxpose.xlu0.c.b16.cont [2/8] %v662, 128
        %1079 = vxpose.xlu0.c.b16.cont [3/8] %v664, 128
        %1080 = vxpose.xlu0.c.b16.cont [4/8] %v666, 128
        %1081 = vxpose.xlu0.c.b16.cont [5/8] %v668, 128
        %1082 = vxpose.xlu0.c.b16.cont [6/8] %v670, 128
        %1083 = vxpose.xlu0.c.b16.cont [7/8] %v672, 128
        %1084 = vxpose.xlu0.c.b16.end [8/8] %v674, 128
        %v1085 = vpop.trf.xlu0
        %v1086 = vpop.trf.xlu0
        %v1087 = vpop.trf.xlu0
        %v1088 = vpop.trf.xlu0
        %v1089 = vpop.trf.xlu0
        %v1090 = vpop.trf.xlu0
        %v1091 = vpop.trf.xlu0
        %v1092 = vpop.trf.xlu0
        %1093 = vxpose.xlu0.c.b16.start [1/8] %v661, 128
        %1094 = vxpose.xlu0.c.b16.cont [2/8] %v663, 128
        %1095 = vxpose.xlu0.c.b16.cont [3/8] %v665, 128
        %1096 = vxpose.xlu0.c.b16.cont [4/8] %v667, 128
        %1097 = vxpose.xlu0.c.b16.cont [5/8] %v669, 128
        %1098 = vxpose.xlu0.c.b16.cont [6/8] %v671, 128
        %1099 = vxpose.xlu0.c.b16.cont [7/8] %v673, 128
        %1100 = vxpose.xlu0.c.b16.end [8/8] %v675, 128
        %v1101 = vpop.trf.xlu0
        %v1102 = vpop.trf.xlu0
        %v1103 = vpop.trf.xlu0
        %v1104 = vpop.trf.xlu0
        %v1105 = vpop.trf.xlu0
        %v1106 = vpop.trf.xlu0
        %v1107 = vpop.trf.xlu0
        %v1108 = vpop.trf.xlu0
        %1109 = vxpose.xlu0.c.b16.start [1/8] %v676, 128
        %1110 = vxpose.xlu0.c.b16.cont [2/8] %v678, 128
        %1111 = vxpose.xlu0.c.b16.cont [3/8] %v680, 128
        %1112 = vxpose.xlu0.c.b16.cont [4/8] %v682, 128
        %1113 = vxpose.xlu0.c.b16.cont [5/8] %v684, 128
        %1114 = vxpose.xlu0.c.b16.cont [6/8] %v686, 128
        %1115 = vxpose.xlu0.c.b16.cont [7/8] %v688, 128
        %1116 = vxpose.xlu0.c.b16.end [8/8] %v690, 128
        %v1117 = vpop.trf.xlu0
        %v1118 = vpop.trf.xlu0
        %v1119 = vpop.trf.xlu0
        %v1120 = vpop.trf.xlu0
        %v1121 = vpop.trf.xlu0
        %v1122 = vpop.trf.xlu0
        %v1123 = vpop.trf.xlu0
        %v1124 = vpop.trf.xlu0
        %1125 = vxpose.xlu0.c.b16.start [1/8] %v677, 128
        %1126 = vxpose.xlu0.c.b16.cont [2/8] %v679, 128
        %1127 = vxpose.xlu0.c.b16.cont [3/8] %v681, 128
        %1128 = vxpose.xlu0.c.b16.cont [4/8] %v683, 128
        %1129 = vxpose.xlu0.c.b16.cont [5/8] %v685, 128
        %1130 = vxpose.xlu0.c.b16.cont [6/8] %v687, 128
        %1131 = vxpose.xlu0.c.b16.cont [7/8] %v689, 128
        %1132 = vxpose.xlu0.c.b16.end [8/8] %v691, 128
        %v1133 = vpop.trf.xlu0
        %v1134 = vpop.trf.xlu0
        %v1135 = vpop.trf.xlu0
        %v1136 = vpop.trf.xlu0
        %v1137 = vpop.trf.xlu0
        %v1138 = vpop.trf.xlu0
        %v1139 = vpop.trf.xlu0
        %v1140 = vpop.trf.xlu0
        %1141 = vmatprep.subr.bf16.mxu0 0
        %1142 = vmatpush1.bf16.msra.mxu0 %v788
        %1143 = vmatprep.subr.bf16.mxu0 0
        %1144 = vmatpush1.bf16.msra.mxu0 %v789
        %1145 = vmatprep.subr.bf16.mxu0 0
        %1146 = vmatpush1.bf16.msra.mxu0 %v790
        %1147 = vmatprep.subr.bf16.mxu0 0
        %1148 = vmatpush1.bf16.msra.mxu0 %v791
        %1149 = vmatprep.subr.bf16.mxu0 0
        %1150 = vmatpush1.bf16.msra.mxu0 %v792
        %1151 = vmatprep.subr.bf16.mxu0 0
        %1152 = vmatpush1.bf16.msra.mxu0 %v793
        %1153 = vmatprep.subr.bf16.mxu0 0
        %1154 = vmatpush1.bf16.msra.mxu0 %v794
        %1155 = vmatprep.subr.bf16.mxu0 0
        %1156 = vmatpush1.bf16.msra.mxu0 %v795
        %1157 = vmatprep.subr.bf16.mxu0 0
        %1158 = vmatpush1.bf16.msra.mxu0 %v796
        %1159 = vmatprep.subr.bf16.mxu0 0
        %1160 = vmatpush1.bf16.msra.mxu0 %v797
        %1161 = vmatprep.subr.bf16.mxu0 0
        %1162 = vmatpush1.bf16.msra.mxu0 %v798
        %1163 = vmatprep.subr.bf16.mxu0 0
        %1164 = vmatpush1.bf16.msra.mxu0 %v799
        %1165 = vmatprep.subr.bf16.mxu0 0
        %1166 = vmatpush1.bf16.msra.mxu0 %v800
        %1167 = vmatprep.subr.bf16.mxu0 0
        %1168 = vmatpush1.bf16.msra.mxu0 %v801
        %1169 = vmatprep.subr.bf16.mxu0 0
        %1170 = vmatpush1.bf16.msra.mxu0 %v802
        %1171 = vmatprep.subr.bf16.mxu0 0
        %1172 = vmatpush1.bf16.msra.mxu0 %v803
        %1173 = vmatprep.mubr.bf16.mxu0 %v1117
        %1174 = vmatmul.mubr.bf16.gmra.mrb[0].mxu0 %v1085
        %v1175 = vpop.f32.mrb[0].mxu0
        %v1176 = vadd.f32 0.0, %v1175
        %v1177 = vpop.f32.mrb[0].mxu0
        %v1178 = vpop.f32.mrb[0].mxu0
        %v1179 = vadd.f32 0.0, %v1178
        %v1180 = vpop.f32.mrb[0].mxu0
        %1181 = vmatprep.mubr.bf16.mxu0 %v1118
        %1182 = vmatmul.mubr.bf16.gmra.mrb[0].mxu0 %v1086
        %v1183 = vpop.f32.mrb[0].mxu0
        %v1184 = vadd.f32 0.0, %v1183
        %v1185 = vpop.f32.mrb[0].mxu0
        %v1186 = vpop.f32.mrb[0].mxu0
        %v1187 = vadd.f32 0.0, %v1186
        %v1188 = vpop.f32.mrb[0].mxu0
        %1189 = vmatprep.mubr.bf16.mxu0 %v1119
        %1190 = vmatmul.mubr.bf16.gmra.mrb[0].mxu0 %v1087
        %v1191 = vpop.f32.mrb[0].mxu0
        %v1192 = vadd.f32 0.0, %v1191
        %v1193 = vpop.f32.mrb[0].mxu0
        %v1194 = vpop.f32.mrb[0].mxu0
        %v1195 = vadd.f32 0.0, %v1194
        %v1196 = vpop.f32.mrb[0].mxu0
        %1197 = vmatprep.mubr.bf16.mxu0 %v1120
        %1198 = vmatmul.mubr.bf16.gmra.mrb[0].mxu0 %v1088
        %v1199 = vpop.f32.mrb[0].mxu0
        %v1200 = vadd.f32 0.0, %v1199
        %v1201 = vpop.f32.mrb[0].mxu0
        %v1202 = vpop.f32.mrb[0].mxu0
        %v1203 = vadd.f32 0.0, %v1202
        %v1204 = vpop.f32.mrb[0].mxu0
        %1205 = vmatprep.mubr.bf16.mxu0 %v1121
        %1206 = vmatmul.mubr.bf16.gmra.mrb[0].mxu0 %v1089
        %v1207 = vpop.f32.mrb[0].mxu0
        %v1208 = vadd.f32 0.0, %v1207
        %v1209 = vpop.f32.mrb[0].mxu0
        %v1210 = vpop.f32.mrb[0].mxu0
        %v1211 = vadd.f32 0.0, %v1210
        %v1212 = vpop.f32.mrb[0].mxu0
        %1213 = vmatprep.mubr.bf16.mxu0 %v1122
        %1214 = vmatmul.mubr.bf16.gmra.mrb[0].mxu0 %v1090
        %v1215 = vpop.f32.mrb[0].mxu0
        %v1216 = vadd.f32 0.0, %v1215
        %v1217 = vpop.f32.mrb[0].mxu0
        %v1218 = vpop.f32.mrb[0].mxu0
        %v1219 = vadd.f32 0.0, %v1218
        %v1220 = vpop.f32.mrb[0].mxu0
        %1221 = vmatprep.mubr.bf16.mxu0 %v1123
        %1222 = vmatmul.mubr.bf16.gmra.mrb[0].mxu0 %v1091
        %v1223 = vpop.f32.mrb[0].mxu0
        %v1224 = vadd.f32 0.0, %v1223
        %v1225 = vpop.f32.mrb[0].mxu0
        %v1226 = vpop.f32.mrb[0].mxu0
        %v1227 = vadd.f32 0.0, %v1226
        %v1228 = vpop.f32.mrb[0].mxu0
        %1229 = vmatprep.mubr.bf16.mxu0 %v1124
        %1230 = vmatmul.mubr.bf16.gmra.mrb[0].mxu0 %v1092
        %v1231 = vpop.f32.mrb[0].mxu0
        %v1232 = vadd.f32 0.0, %v1231
        %v1233 = vpop.f32.mrb[0].mxu0
        %v1234 = vpop.f32.mrb[0].mxu0
        %v1235 = vadd.f32 0.0, %v1234
        %v1236 = vpop.f32.mrb[0].mxu0
        %1237 = vmatprep.mubr.bf16.mxu0 %v1133
        %1238 = vmatmul.mubr.bf16.gmra.mrb[0].mxu0 %v1101
        %v1239 = vpop.f32.mrb[0].mxu0
        %v1240 = vadd.f32 0.0, %v1239
        %v1241 = vpop.f32.mrb[0].mxu0
        %v1242 = vpop.f32.mrb[0].mxu0
        %v1243 = vadd.f32 0.0, %v1242
        %v1244 = vpop.f32.mrb[0].mxu0
        %1245 = vmatprep.mubr.bf16.mxu0 %v1134
        %1246 = vmatmul.mubr.bf16.gmra.mrb[0].mxu0 %v1102
        %v1247 = vpop.f32.mrb[0].mxu0
        %v1248 = vadd.f32 0.0, %v1247
        %v1249 = vpop.f32.mrb[0].mxu0
        %v1250 = vpop.f32.mrb[0].mxu0
        %v1251 = vadd.f32 0.0, %v1250
        %v1252 = vpop.f32.mrb[0].mxu0
        %1253 = vmatprep.mubr.bf16.mxu0 %v1135
        %1254 = vmatmul.mubr.bf16.gmra.mrb[0].mxu0 %v1103
        %v1255 = vpop.f32.mrb[0].mxu0
        %v1256 = vadd.f32 0.0, %v1255
        %v1257 = vpop.f32.mrb[0].mxu0
        %v1258 = vpop.f32.mrb[0].mxu0
        %v1259 = vadd.f32 0.0, %v1258
        %v1260 = vpop.f32.mrb[0].mxu0
        %1261 = vmatprep.mubr.bf16.mxu0 %v1136
        %1262 = vmatmul.mubr.bf16.gmra.mrb[0].mxu0 %v1104
        %v1263 = vpop.f32.mrb[0].mxu0
        %v1264 = vadd.f32 0.0, %v1263
        %v1265 = vpop.f32.mrb[0].mxu0
        %v1266 = vpop.f32.mrb[0].mxu0
        %v1267 = vadd.f32 0.0, %v1266
        %v1268 = vpop.f32.mrb[0].mxu0
        %1269 = vmatprep.mubr.bf16.mxu0 %v1137
        %1270 = vmatmul.mubr.bf16.gmra.mrb[0].mxu0 %v1105
        %v1271 = vpop.f32.mrb[0].mxu0
        %v1272 = vadd.f32 0.0, %v1271
        %v1273 = vpop.f32.mrb[0].mxu0
        %v1274 = vpop.f32.mrb[0].mxu0
        %v1275 = vadd.f32 0.0, %v1274
        %v1276 = vpop.f32.mrb[0].mxu0
        %1277 = vmatprep.mubr.bf16.mxu0 %v1138
        %1278 = vmatmul.mubr.bf16.gmra.mrb[0].mxu0 %v1106
        %v1279 = vpop.f32.mrb[0].mxu0
        %v1280 = vadd.f32 0.0, %v1279
        %v1281 = vpop.f32.mrb[0].mxu0
        %v1282 = vpop.f32.mrb[0].mxu0
        %v1283 = vadd.f32 0.0, %v1282
        %v1284 = vpop.f32.mrb[0].mxu0
        %1285 = vmatprep.mubr.bf16.mxu0 %v1139
        %1286 = vmatmul.mubr.bf16.gmra.mrb[0].mxu0 %v1107
        %v1287 = vpop.f32.mrb[0].mxu0
        %v1288 = vadd.f32 0.0, %v1287
        %v1289 = vpop.f32.mrb[0].mxu0
        %v1290 = vpop.f32.mrb[0].mxu0
        %v1291 = vadd.f32 0.0, %v1290
        %v1292 = vpop.f32.mrb[0].mxu0
        %1293 = vmatprep.mubr.bf16.mxu0 %v1140
        %1294 = vmatmul.mubr.bf16.gmra.mrb[0].mxu0 %v1108
        %v1295 = vpop.f32.mrb[0].mxu0
        %v1296 = vadd.f32 0.0, %v1295
        %v1297 = vpop.f32.mrb[0].mxu0
        %v1298 = vpop.f32.mrb[0].mxu0
        %v1299 = vadd.f32 0.0, %v1298
        %v1300 = vpop.f32.mrb[0].mxu0
        %1301 = vdwg.mxu0
        %v1302 = vadd.f32 %v1045, %v1176
        %v1303 = vadd.f32 %v1046, %v1179
        %v1304 = vadd.f32 %v1047, %v1184
        %v1305 = vadd.f32 %v1048, %v1187
        %v1306 = vadd.f32 %v1049, %v1192
        %v1307 = vadd.f32 %v1050, %v1195
        %v1308 = vadd.f32 %v1051, %v1200
        %v1309 = vadd.f32 %v1052, %v1203
        %v1310 = vadd.f32 %v1053, %v1208
        %v1311 = vadd.f32 %v1054, %v1211
        %v1312 = vadd.f32 %v1055, %v1216
        %v1313 = vadd.f32 %v1056, %v1219
        %v1314 = vadd.f32 %v1057, %v1224
        %v1315 = vadd.f32 %v1058, %v1227
        %v1316 = vadd.f32 %v1059, %v1232
        %v1317 = vadd.f32 %v1060, %v1235
        %v1318 = vadd.f32 %v1061, %v1240
        %v1319 = vadd.f32 %v1062, %v1243
        %v1320 = vadd.f32 %v1063, %v1248
        %v1321 = vadd.f32 %v1064, %v1251
        %v1322 = vadd.f32 %v1065, %v1256
        %v1323 = vadd.f32 %v1066, %v1259
        %v1324 = vadd.f32 %v1067, %v1264
        %v1325 = vadd.f32 %v1068, %v1267
        %v1326 = vadd.f32 %v1069, %v1272
        %v1327 = vadd.f32 %v1070, %v1275
        %v1328 = vadd.f32 %v1071, %v1280
        %v1329 = vadd.f32 %v1072, %v1283
        %v1330 = vadd.f32 %v1073, %v1288
        %v1331 = vadd.f32 %v1074, %v1291
        %v1332 = vadd.f32 %v1075, %v1296
        %v1333 = vadd.f32 %v1076, %v1299
        %1334 = vst [vmem:[#allocation2 + $0x10] sm:$0xff] %v1302
        %1335 = vst [vmem:[#allocation2 + $0x28] sm:$0xff] %v1303
        %1336 = vst [vmem:[#allocation2 + $0x40] sm:$0xff] %v1304
        %1337 = vst [vmem:[#allocation2 + $0x58] sm:$0xff] %v1305
        %1338 = vst [vmem:[#allocation2 + $0x70] sm:$0xff] %v1306
        %1339 = vst [vmem:[#allocation2 + $0x88] sm:$0xff] %v1307
        %1340 = vst [vmem:[#allocation2 + $0xa0] sm:$0xff] %v1308
        %1341 = vst [vmem:[#allocation2 + $0xb8] sm:$0xff] %v1309
        %1342 = vst [vmem:[#allocation2 + $0xd0] sm:$0xff] %v1310
        %1343 = vst [vmem:[#allocation2 + $0xe8] sm:$0xff] %v1311
        %1344 = vst [vmem:[#allocation2 + $0x100] sm:$0xff] %v1312
        %1345 = vst [vmem:[#allocation2 + $0x118] sm:$0xff] %v1313
        %1346 = vst [vmem:[#allocation2 + $0x130] sm:$0xff] %v1314
        %1347 = vst [vmem:[#allocation2 + $0x148] sm:$0xff] %v1315
        %1348 = vst [vmem:[#allocation2 + $0x160] sm:$0xff] %v1316
        %1349 = vst [vmem:[#allocation2 + $0x178] sm:$0xff] %v1317
        %1350 = vst [vmem:[#allocation2 + $0x190] sm:$0xff] %v1318
        %1351 = vst [vmem:[#allocation2 + $0x1a8] sm:$0xff] %v1319
        %1352 = vst [vmem:[#allocation2 + $0x1c0] sm:$0xff] %v1320
        %1353 = vst [vmem:[#allocation2 + $0x1d8] sm:$0xff] %v1321
        %1354 = vst [vmem:[#allocation2 + $0x1f0] sm:$0xff] %v1322
        %1355 = vst [vmem:[#allocation2 + $0x208] sm:$0xff] %v1323
        %1356 = vst [vmem:[#allocation2 + $0x220] sm:$0xff] %v1324
        %1357 = vst [vmem:[#allocation2 + $0x238] sm:$0xff] %v1325
        %1358 = vst [vmem:[#allocation2 + $0x250] sm:$0xff] %v1326
        %1359 = vst [vmem:[#allocation2 + $0x268] sm:$0xff] %v1327
        %1360 = vst [vmem:[#allocation2 + $0x280] sm:$0xff] %v1328
        %1361 = vst [vmem:[#allocation2 + $0x298] sm:$0xff] %v1329
        %1362 = vst [vmem:[#allocation2 + $0x2b0] sm:$0xff] %v1330
        %1363 = vst [vmem:[#allocation2 + $0x2c8] sm:$0xff] %v1331
        %1364 = vst [vmem:[#allocation2 + $0x2e0] sm:$0xff] %v1332
        %1365 = vst [vmem:[#allocation2 + $0x2f8] sm:$0xff] %v1333
        %p1366 = scmp.eq.s32.totalorder %s25, 1
        // Predicated region
        $region95: #{comp_graph_conv.1} parent=81 // pred_check
          %p1367 = pneg %p1366
        $region96: #{comp_graph_conv.1} parent=81 // pred_check_branch
          %1369 = sbr.rel (%p1367) target = $region98
        $region97: #{comp_graph_conv.1} parent=81 // pred_region
          %v1370 = vld [vmem:[%s454] sm:$0xff]
          %v1371 = vld [vmem:[%s454 + $0x8] sm:$0xff]
          %v1372 = vld [vmem:[%s454 + $0x10] sm:$0xff]
          %v1373 = vld [vmem:[%s454 + $0x18] sm:$0xff]
          %v1374 = vld [vmem:[%s454 + $0x20] sm:$0xff]
          %v1375 = vld [vmem:[%s454 + $0x28] sm:$0xff]
          %v1376 = vld [vmem:[%s454 + $0x30] sm:$0xff]
          %v1377 = vld [vmem:[%s454 + $0x38] sm:$0xff]
          %v1378 = vld [vmem:[%s454 + $0x40] sm:$0xff]
          %v1379 = vld [vmem:[%s454 + $0x48] sm:$0xff]
          %v1380 = vld [vmem:[%s454 + $0x50] sm:$0xff]
          %v1381 = vld [vmem:[%s454 + $0x58] sm:$0xff]
          %v1382 = vld [vmem:[%s454 + $0x60] sm:$0xff]
          %v1383 = vld [vmem:[%s454 + $0x68] sm:$0xff]
          %v1384 = vld [vmem:[%s454 + $0x70] sm:$0xff]
          %v1385 = vld [vmem:[%s454 + $0x78] sm:$0xff]
          %v1386 = vld [vmem:[%s454 + $0x80] sm:$0xff]
          %v1387 = vld [vmem:[%s454 + $0x88] sm:$0xff]
          %v1388 = vld [vmem:[%s454 + $0x90] sm:$0xff]
          %v1389 = vld [vmem:[%s454 + $0x98] sm:$0xff]
          %v1390 = vld [vmem:[%s454 + $0xa0] sm:$0xff]
          %v1391 = vld [vmem:[%s454 + $0xa8] sm:$0xff]
          %v1392 = vld [vmem:[%s454 + $0xb0] sm:$0xff]
          %v1393 = vld [vmem:[%s454 + $0xb8] sm:$0xff]
          %v1394 = vld [vmem:[%s454 + $0xc0] sm:$0xff]
          %v1395 = vld [vmem:[%s454 + $0xc8] sm:$0xff]
          %v1396 = vld [vmem:[%s454 + $0xd0] sm:$0xff]
          %v1397 = vld [vmem:[%s454 + $0xd8] sm:$0xff]
          %v1398 = vld [vmem:[%s454 + $0xe0] sm:$0xff]
          %v1399 = vld [vmem:[%s454 + $0xe8] sm:$0xff]
          %v1400 = vld [vmem:[%s454 + $0xf0] sm:$0xff]
          %v1401 = vld [vmem:[%s454 + $0xf8] sm:$0xff]
          %1402 = vst [vmem:[#allocation2] sm:$0xff] %v1370
          %1403 = vst [vmem:[#allocation2 + $0x18] sm:$0xff] %v1371
          %1404 = vst [vmem:[#allocation2 + $0x30] sm:$0xff] %v1372
          %1405 = vst [vmem:[#allocation2 + $0x48] sm:$0xff] %v1373
          %1406 = vst [vmem:[#allocation2 + $0x60] sm:$0xff] %v1374
          %1407 = vst [vmem:[#allocation2 + $0x78] sm:$0xff] %v1375
          %1408 = vst [vmem:[#allocation2 + $0x90] sm:$0xff] %v1376
          %1409 = vst [vmem:[#allocation2 + $0xa8] sm:$0xff] %v1377
          %1410 = vst [vmem:[#allocation2 + $0xc0] sm:$0xff] %v1378
          %1411 = vst [vmem:[#allocation2 + $0xd8] sm:$0xff] %v1379
          %1412 = vst [vmem:[#allocation2 + $0xf0] sm:$0xff] %v1380
          %1413 = vst [vmem:[#allocation2 + $0x108] sm:$0xff] %v1381
          %1414 = vst [vmem:[#allocation2 + $0x120] sm:$0xff] %v1382
          %1415 = vst [vmem:[#allocation2 + $0x138] sm:$0xff] %v1383
          %1416 = vst [vmem:[#allocation2 + $0x150] sm:$0xff] %v1384
          %1417 = vst [vmem:[#allocation2 + $0x168] sm:$0xff] %v1385
          %1418 = vst [vmem:[#allocation2 + $0x180] sm:$0xff] %v1386
          %1419 = vst [vmem:[#allocation2 + $0x198] sm:$0xff] %v1387
          %1420 = vst [vmem:[#allocation2 + $0x1b0] sm:$0xff] %v1388
          %1421 = vst [vmem:[#allocation2 + $0x1c8] sm:$0xff] %v1389
          %1422 = vst [vmem:[#allocation2 + $0x1e0] sm:$0xff] %v1390
          %1423 = vst [vmem:[#allocation2 + $0x1f8] sm:$0xff] %v1391
          %1424 = vst [vmem:[#allocation2 + $0x210] sm:$0xff] %v1392
          %1425 = vst [vmem:[#allocation2 + $0x228] sm:$0xff] %v1393
          %1426 = vst [vmem:[#allocation2 + $0x240] sm:$0xff] %v1394
          %1427 = vst [vmem:[#allocation2 + $0x258] sm:$0xff] %v1395
          %1428 = vst [vmem:[#allocation2 + $0x270] sm:$0xff] %v1396
          %1429 = vst [vmem:[#allocation2 + $0x288] sm:$0xff] %v1397
          %1430 = vst [vmem:[#allocation2 + $0x2a0] sm:$0xff] %v1398
          %1431 = vst [vmem:[#allocation2 + $0x2b8] sm:$0xff] %v1399
          %1432 = vst [vmem:[#allocation2 + $0x2d0] sm:$0xff] %v1400
          %1433 = vst [vmem:[#allocation2 + $0x2e8] sm:$0xff] %v1401
          %v1434 = vld [vmem:[#allocation2] sm:$0xff]
          %v1435 = vld [vmem:[#allocation2 + $0x8] sm:$0xff]
          %v1436 = vld [vmem:[#allocation2 + $0x10] sm:$0xff]
          %v1437 = vld [vmem:[#allocation2 + $0x18] sm:$0xff]
          %v1438 = vld [vmem:[#allocation2 + $0x20] sm:$0xff]
          %v1439 = vld [vmem:[#allocation2 + $0x28] sm:$0xff]
          %v1440 = vld [vmem:[#allocation2 + $0x30] sm:$0xff]
          %v1441 = vld [vmem:[#allocation2 + $0x38] sm:$0xff]
          %v1442 = vld [vmem:[#allocation2 + $0x40] sm:$0xff]
          %v1443 = vld [vmem:[#allocation2 + $0x48] sm:$0xff]
          %v1444 = vld [vmem:[#allocation2 + $0x50] sm:$0xff]
          %v1445 = vld [vmem:[#allocation2 + $0x58] sm:$0xff]
          %v1446 = vld [vmem:[#allocation2 + $0x60] sm:$0xff]
          %v1447 = vld [vmem:[#allocation2 + $0x68] sm:$0xff]
          %v1448 = vld [vmem:[#allocation2 + $0x70] sm:$0xff]
          %v1449 = vld [vmem:[#allocation2 + $0x78] sm:$0xff]
          %v1450 = vld [vmem:[#allocation2 + $0x80] sm:$0xff]
          %v1451 = vld [vmem:[#allocation2 + $0x88] sm:$0xff]
          %v1452 = vld [vmem:[#allocation2 + $0x90] sm:$0xff]
          %v1453 = vld [vmem:[#allocation2 + $0x98] sm:$0xff]
          %v1454 = vld [vmem:[#allocation2 + $0xa0] sm:$0xff]
          %v1455 = vld [vmem:[#allocation2 + $0xa8] sm:$0xff]
          %v1456 = vld [vmem:[#allocation2 + $0xb0] sm:$0xff]
          %v1457 = vld [vmem:[#allocation2 + $0xb8] sm:$0xff]
          %v1458 = vld [vmem:[#allocation2 + $0xc0] sm:$0xff]
          %v1459 = vld [vmem:[#allocation2 + $0xc8] sm:$0xff]
          %v1460 = vld [vmem:[#allocation2 + $0xd0] sm:$0xff]
          %v1461 = vld [vmem:[#allocation2 + $0xd8] sm:$0xff]
          %v1462 = vld [vmem:[#allocation2 + $0xe0] sm:$0xff]
          %v1463 = vld [vmem:[#allocation2 + $0xe8] sm:$0xff]
          %v1464 = vld [vmem:[#allocation2 + $0xf0] sm:$0xff]
          %v1465 = vld [vmem:[#allocation2 + $0xf8] sm:$0xff]
          %v1466 = vld [vmem:[#allocation2 + $0x100] sm:$0xff]
          %v1467 = vld [vmem:[#allocation2 + $0x108] sm:$0xff]
          %v1468 = vld [vmem:[#allocation2 + $0x110] sm:$0xff]
          %v1469 = vld [vmem:[#allocation2 + $0x118] sm:$0xff]
          %v1470 = vld [vmem:[#allocation2 + $0x120] sm:$0xff]
          %v1471 = vld [vmem:[#allocation2 + $0x128] sm:$0xff]
          %v1472 = vld [vmem:[#allocation2 + $0x130] sm:$0xff]
          %v1473 = vld [vmem:[#allocation2 + $0x138] sm:$0xff]
          %v1474 = vld [vmem:[#allocation2 + $0x140] sm:$0xff]
          %v1475 = vld [vmem:[#allocation2 + $0x148] sm:$0xff]
          %v1476 = vld [vmem:[#allocation2 + $0x150] sm:$0xff]
          %v1477 = vld [vmem:[#allocation2 + $0x158] sm:$0xff]
          %v1478 = vld [vmem:[#allocation2 + $0x160] sm:$0xff]
          %v1479 = vld [vmem:[#allocation2 + $0x168] sm:$0xff]
          %v1480 = vld [vmem:[#allocation2 + $0x170] sm:$0xff]
          %v1481 = vld [vmem:[#allocation2 + $0x178] sm:$0xff]
          %v1482 = vld [vmem:[#allocation2 + $0x180] sm:$0xff]
          %v1483 = vld [vmem:[#allocation2 + $0x188] sm:$0xff]
          %v1484 = vld [vmem:[#allocation2 + $0x190] sm:$0xff]
          %v1485 = vld [vmem:[#allocation2 + $0x198] sm:$0xff]
          %v1486 = vld [vmem:[#allocation2 + $0x1a0] sm:$0xff]
          %v1487 = vld [vmem:[#allocation2 + $0x1a8] sm:$0xff]
          %v1488 = vld [vmem:[#allocation2 + $0x1b0] sm:$0xff]
          %v1489 = vld [vmem:[#allocation2 + $0x1b8] sm:$0xff]
          %v1490 = vld [vmem:[#allocation2 + $0x1c0] sm:$0xff]
          %v1491 = vld [vmem:[#allocation2 + $0x1c8] sm:$0xff]
          %v1492 = vld [vmem:[#allocation2 + $0x1d0] sm:$0xff]
          %v1493 = vld [vmem:[#allocation2 + $0x1d8] sm:$0xff]
          %v1494 = vld [vmem:[#allocation2 + $0x1e0] sm:$0xff]
          %v1495 = vld [vmem:[#allocation2 + $0x1e8] sm:$0xff]
          %v1496 = vld [vmem:[#allocation2 + $0x1f0] sm:$0xff]
          %v1497 = vld [vmem:[#allocation2 + $0x1f8] sm:$0xff]
          %v1498 = vld [vmem:[#allocation2 + $0x200] sm:$0xff]
          %v1499 = vld [vmem:[#allocation2 + $0x208] sm:$0xff]
          %v1500 = vld [vmem:[#allocation2 + $0x210] sm:$0xff]
          %v1501 = vld [vmem:[#allocation2 + $0x218] sm:$0xff]
          %v1502 = vld [vmem:[#allocation2 + $0x220] sm:$0xff]
          %v1503 = vld [vmem:[#allocation2 + $0x228] sm:$0xff]
          %v1504 = vld [vmem:[#allocation2 + $0x230] sm:$0xff]
          %v1505 = vld [vmem:[#allocation2 + $0x238] sm:$0xff]
          %v1506 = vld [vmem:[#allocation2 + $0x240] sm:$0xff]
          %v1507 = vld [vmem:[#allocation2 + $0x248] sm:$0xff]
          %v1508 = vld [vmem:[#allocation2 + $0x250] sm:$0xff]
          %v1509 = vld [vmem:[#allocation2 + $0x258] sm:$0xff]
          %v1510 = vld [vmem:[#allocation2 + $0x260] sm:$0xff]
          %v1511 = vld [vmem:[#allocation2 + $0x268] sm:$0xff]
          %v1512 = vld [vmem:[#allocation2 + $0x270] sm:$0xff]
          %v1513 = vld [vmem:[#allocation2 + $0x278] sm:$0xff]
          %v1514 = vld [vmem:[#allocation2 + $0x280] sm:$0xff]
          %v1515 = vld [vmem:[#allocation2 + $0x288] sm:$0xff]
          %v1516 = vld [vmem:[#allocation2 + $0x290] sm:$0xff]
          %v1517 = vld [vmem:[#allocation2 + $0x298] sm:$0xff]
          %v1518 = vld [vmem:[#allocation2 + $0x2a0] sm:$0xff]
          %v1519 = vld [vmem:[#allocation2 + $0x2a8] sm:$0xff]
          %v1520 = vld [vmem:[#allocation2 + $0x2b0] sm:$0xff]
          %v1521 = vld [vmem:[#allocation2 + $0x2b8] sm:$0xff]
          %v1522 = vld [vmem:[#allocation2 + $0x2c0] sm:$0xff]
          %v1523 = vld [vmem:[#allocation2 + $0x2c8] sm:$0xff]
          %v1524 = vld [vmem:[#allocation2 + $0x2d0] sm:$0xff]
          %v1525 = vld [vmem:[#allocation2 + $0x2d8] sm:$0xff]
          %v1526 = vld [vmem:[#allocation2 + $0x2e0] sm:$0xff]
          %v1527 = vld [vmem:[#allocation2 + $0x2e8] sm:$0xff]
          %v1528 = vld [vmem:[#allocation2 + $0x2f0] sm:$0xff]
          %v1529 = vld [vmem:[#allocation2 + $0x2f8] sm:$0xff]
          %v1530 = vld [vmem:[%s5] sm:$0xff]
          %v1531 = vld [vmem:[%s5 + $0x8] sm:$0xff]
          %v1532 = vld [vmem:[%s5 + $0x10] sm:$0xff]
          %v1533 = vld [vmem:[%s5 + $0x18] sm:$0xff]
          %v1534 = vld [vmem:[%s5 + $0x20] sm:$0xff]
          %v1535 = vld [vmem:[%s5 + $0x28] sm:$0xff]
          %v1536 = vld [vmem:[%s5 + $0x30] sm:$0xff]
          %v1537 = vld [vmem:[%s5 + $0x38] sm:$0xff]
          %v1538 = vld [vmem:[%s5 + $0x40] sm:$0xff]
          %v1539 = vld [vmem:[%s5 + $0x48] sm:$0xff]
          %v1540 = vld [vmem:[%s5 + $0x50] sm:$0xff]
          %v1541 = vld [vmem:[%s5 + $0x58] sm:$0xff]
          %v1542 = vld [vmem:[%s5 + $0x60] sm:$0xff]
          %v1543 = vld [vmem:[%s5 + $0x68] sm:$0xff]
          %v1544 = vld [vmem:[%s5 + $0x70] sm:$0xff]
          %v1545 = vld [vmem:[%s5 + $0x78] sm:$0xff]
          %v1546 = vld [vmem:[%s5 + $0x80] sm:$0xff]
          %v1547 = vld [vmem:[%s5 + $0x88] sm:$0xff]
          %v1548 = vld [vmem:[%s5 + $0x90] sm:$0xff]
          %v1549 = vld [vmem:[%s5 + $0x98] sm:$0xff]
          %v1550 = vld [vmem:[%s5 + $0xa0] sm:$0xff]
          %v1551 = vld [vmem:[%s5 + $0xa8] sm:$0xff]
          %v1552 = vld [vmem:[%s5 + $0xb0] sm:$0xff]
          %v1553 = vld [vmem:[%s5 + $0xb8] sm:$0xff]
          %v1554 = vld [vmem:[%s5 + $0xc0] sm:$0xff]
          %v1555 = vld [vmem:[%s5 + $0xc8] sm:$0xff]
          %v1556 = vld [vmem:[%s5 + $0xd0] sm:$0xff]
          %v1557 = vld [vmem:[%s5 + $0xd8] sm:$0xff]
          %v1558 = vld [vmem:[%s5 + $0xe0] sm:$0xff]
          %v1559 = vld [vmem:[%s5 + $0xe8] sm:$0xff]
          %v1560 = vld [vmem:[%s5 + $0xf0] sm:$0xff]
          %v1561 = vld [vmem:[%s5 + $0xf8] sm:$0xff]
          %v1562 = vld [vmem:[%s5 + $0x100] sm:$0xff]
          %v1563 = vld [vmem:[%s5 + $0x108] sm:$0xff]
          %v1564 = vld [vmem:[%s5 + $0x110] sm:$0xff]
          %v1565 = vld [vmem:[%s5 + $0x118] sm:$0xff]
          %v1566 = vld [vmem:[%s5 + $0x120] sm:$0xff]
          %v1567 = vld [vmem:[%s5 + $0x128] sm:$0xff]
          %v1568 = vld [vmem:[%s5 + $0x130] sm:$0xff]
          %v1569 = vld [vmem:[%s5 + $0x138] sm:$0xff]
          %v1570 = vld [vmem:[%s5 + $0x140] sm:$0xff]
          %v1571 = vld [vmem:[%s5 + $0x148] sm:$0xff]
          %v1572 = vld [vmem:[%s5 + $0x150] sm:$0xff]
          %v1573 = vld [vmem:[%s5 + $0x158] sm:$0xff]
          %v1574 = vld [vmem:[%s5 + $0x160] sm:$0xff]
          %v1575 = vld [vmem:[%s5 + $0x168] sm:$0xff]
          %v1576 = vld [vmem:[%s5 + $0x170] sm:$0xff]
          %v1577 = vld [vmem:[%s5 + $0x178] sm:$0xff]
          %v1578 = vld [vmem:[%s460] sm:$0xff]
          %v1579 = vld [vmem:[%s460 + $0x8] sm:$0xff]
          %v1580 = vld [vmem:[%s460 + $0x10] sm:$0xff]
          %v1581 = vld [vmem:[%s460 + $0x18] sm:$0xff]
          %v1582 = vld [vmem:[%s460 + $0x20] sm:$0xff]
          %v1583 = vld [vmem:[%s460 + $0x28] sm:$0xff]
          %v1584 = vld [vmem:[%s460 + $0x30] sm:$0xff]
          %v1585 = vld [vmem:[%s460 + $0x38] sm:$0xff]
          %v1586 = vld [vmem:[%s460 + $0x40] sm:$0xff]
          %v1587 = vld [vmem:[%s460 + $0x48] sm:$0xff]
          %v1588 = vld [vmem:[%s460 + $0x50] sm:$0xff]
          %v1589 = vld [vmem:[%s460 + $0x58] sm:$0xff]
          %v1590 = vld [vmem:[%s460 + $0x60] sm:$0xff]
          %v1591 = vld [vmem:[%s460 + $0x68] sm:$0xff]
          %v1592 = vld [vmem:[%s460 + $0x70] sm:$0xff]
          %v1593 = vld [vmem:[%s460 + $0x78] sm:$0xff]
          %v1594 = vld [vmem:[%s460 + $0x80] sm:$0xff]
          %v1595 = vld [vmem:[%s460 + $0x88] sm:$0xff]
          %v1596 = vld [vmem:[%s460 + $0x90] sm:$0xff]
          %v1597 = vld [vmem:[%s460 + $0x98] sm:$0xff]
          %v1598 = vld [vmem:[%s460 + $0xa0] sm:$0xff]
          %v1599 = vld [vmem:[%s460 + $0xa8] sm:$0xff]
          %v1600 = vld [vmem:[%s460 + $0xb0] sm:$0xff]
          %v1601 = vld [vmem:[%s460 + $0xb8] sm:$0xff]
          %v1602 = vld [vmem:[%s460 + $0xc0] sm:$0xff]
          %v1603 = vld [vmem:[%s460 + $0xc8] sm:$0xff]
          %v1604 = vld [vmem:[%s460 + $0xd0] sm:$0xff]
          %v1605 = vld [vmem:[%s460 + $0xd8] sm:$0xff]
          %v1606 = vld [vmem:[%s460 + $0xe0] sm:$0xff]
          %v1607 = vld [vmem:[%s460 + $0xe8] sm:$0xff]
          %v1608 = vld [vmem:[%s460 + $0xf0] sm:$0xff]
          %v1609 = vld [vmem:[%s460 + $0xf8] sm:$0xff]
          %1610 = vmatprep.subr.mxu0 0.0
          %1611 = vmatpush1.msra.mxu0 %v1530
          %1612 = vmatprep.subr.mxu0 0.0
          %1613 = vmatpush1.msra.mxu0 %v1531
          %1614 = vmatprep.subr.mxu0 0.0
          %1615 = vmatpush1.msra.mxu0 %v1532
          %1616 = vmatprep.subr.mxu0 0.0
          %1617 = vmatpush1.msra.mxu0 %v1533
          %1618 = vmatprep.subr.mxu0 0.0
          %1619 = vmatpush1.msra.mxu0 %v1534
          %1620 = vmatprep.subr.mxu0 0.0
          %1621 = vmatpush1.msra.mxu0 %v1535
          %1622 = vmatprep.subr.mxu0 0.0
          %1623 = vmatpush1.msra.mxu0 %v1536
          %1624 = vmatprep.subr.mxu0 0.0
          %1625 = vmatpush1.msra.mxu0 %v1537
          %1626 = vmatprep.subr.mxu0 0.0
          %1627 = vmatpush1.msra.mxu0 %v1538
          %1628 = vmatprep.subr.mxu0 0.0
          %1629 = vmatpush1.msra.mxu0 %v1539
          %1630 = vmatprep.subr.mxu0 0.0
          %1631 = vmatpush1.msra.mxu0 %v1540
          %1632 = vmatprep.subr.mxu0 0.0
          %1633 = vmatpush1.msra.mxu0 %v1541
          %1634 = vmatprep.subr.mxu0 0.0
          %1635 = vmatpush1.msra.mxu0 %v1542
          %1636 = vmatprep.subr.mxu0 0.0
          %1637 = vmatpush1.msra.mxu0 %v1543
          %1638 = vmatprep.subr.mxu0 0.0
          %1639 = vmatpush1.msra.mxu0 %v1544
          %1640 = vmatprep.subr.mxu0 0.0
          %1641 = vmatpush1.msra.mxu0 %v1545
          %1642 = vmatprep.subr.mxu0 0.0
          %1643 = vmatpush1.msra.mxu0 %v1546
          %1644 = vmatprep.subr.mxu0 0.0
          %1645 = vmatpush1.msra.mxu0 %v1547
          %1646 = vmatprep.subr.mxu0 0.0
          %1647 = vmatpush1.msra.mxu0 %v1548
          %1648 = vmatprep.subr.mxu0 0.0
          %1649 = vmatpush1.msra.mxu0 %v1549
          %1650 = vmatprep.subr.mxu0 0.0
          %1651 = vmatpush1.msra.mxu0 %v1550
          %1652 = vmatprep.subr.mxu0 0.0
          %1653 = vmatpush1.msra.mxu0 %v1551
          %1654 = vmatprep.subr.mxu0 0.0
          %1655 = vmatpush1.msra.mxu0 %v1552
          %1656 = vmatprep.subr.mxu0 0.0
          %1657 = vmatpush1.msra.mxu0 %v1553
          %1658 = vmatprep.subr.mxu0 0.0
          %1659 = vmatpush1.msra.mxu0 %v1554
          %1660 = vmatprep.subr.mxu0 0.0
          %1661 = vmatpush1.msra.mxu0 %v1555
          %1662 = vmatprep.subr.mxu0 0.0
          %1663 = vmatpush1.msra.mxu0 %v1556
          %1664 = vmatprep.subr.mxu0 0.0
          %1665 = vmatpush1.msra.mxu0 %v1557
          %1666 = vmatprep.subr.mxu0 0.0
          %1667 = vmatpush1.msra.mxu0 %v1558
          %1668 = vmatprep.subr.mxu0 0.0
          %1669 = vmatpush1.msra.mxu0 %v1559
          %1670 = vmatprep.subr.mxu0 0.0
          %1671 = vmatpush1.msra.mxu0 %v1560
          %1672 = vmatprep.subr.mxu0 0.0
          %1673 = vmatpush1.msra.mxu0 %v1561
          %1674 = vmatprep.mubr.f32.mxu0 %v1435
          %1675 = vmatmul.mubr.f32.gmra.mrb[0].mxu0 %v1434
          %v1676 = vpop.f32.mrb[0].mxu0
          %v1677 = vadd.f32 %v1578, %v1676
          %v1678 = vpop.f32.mrb[0].mxu0
          %1679 = vmatprep.mubr.f32.mxu0 %v1438
          %1680 = vmatmul.mubr.f32.gmra.mrb[0].mxu0 %v1437
          %v1681 = vpop.f32.mrb[0].mxu0
          %v1682 = vadd.f32 %v1579, %v1681
          %v1683 = vpop.f32.mrb[0].mxu0
          %1684 = vmatprep.mubr.f32.mxu0 %v1441
          %1685 = vmatmul.mubr.f32.gmra.mrb[0].mxu0 %v1440
          %v1686 = vpop.f32.mrb[0].mxu0
          %v1687 = vadd.f32 %v1580, %v1686
          %v1688 = vpop.f32.mrb[0].mxu0
          %1689 = vmatprep.mubr.f32.mxu0 %v1444
          %1690 = vmatmul.mubr.f32.gmra.mrb[0].mxu0 %v1443
          %v1691 = vpop.f32.mrb[0].mxu0
          %v1692 = vadd.f32 %v1581, %v1691
          %v1693 = vpop.f32.mrb[0].mxu0
          %1694 = vmatprep.mubr.f32.mxu0 %v1447
          %1695 = vmatmul.mubr.f32.gmra.mrb[0].mxu0 %v1446
          %v1696 = vpop.f32.mrb[0].mxu0
          %v1697 = vadd.f32 %v1582, %v1696
          %v1698 = vpop.f32.mrb[0].mxu0
          %1699 = vmatprep.mubr.f32.mxu0 %v1450
          %1700 = vmatmul.mubr.f32.gmra.mrb[0].mxu0 %v1449
          %v1701 = vpop.f32.mrb[0].mxu0
          %v1702 = vadd.f32 %v1583, %v1701
          %v1703 = vpop.f32.mrb[0].mxu0
          %1704 = vmatprep.mubr.f32.mxu0 %v1453
          %1705 = vmatmul.mubr.f32.gmra.mrb[0].mxu0 %v1452
          %v1706 = vpop.f32.mrb[0].mxu0
          %v1707 = vadd.f32 %v1584, %v1706
          %v1708 = vpop.f32.mrb[0].mxu0
          %1709 = vmatprep.mubr.f32.mxu0 %v1456
          %1710 = vmatmul.mubr.f32.gmra.mrb[0].mxu0 %v1455
          %v1711 = vpop.f32.mrb[0].mxu0
          %v1712 = vadd.f32 %v1585, %v1711
          %v1713 = vpop.f32.mrb[0].mxu0
          %1714 = vmatprep.mubr.f32.mxu0 %v1459
          %1715 = vmatmul.mubr.f32.gmra.mrb[0].mxu0 %v1458
          %v1716 = vpop.f32.mrb[0].mxu0
          %v1717 = vadd.f32 %v1586, %v1716
          %v1718 = vpop.f32.mrb[0].mxu0
          %1719 = vmatprep.mubr.f32.mxu0 %v1462
          %1720 = vmatmul.mubr.f32.gmra.mrb[0].mxu0 %v1461
          %v1721 = vpop.f32.mrb[0].mxu0
          %v1722 = vadd.f32 %v1587, %v1721
          %v1723 = vpop.f32.mrb[0].mxu0
          %1724 = vmatprep.mubr.f32.mxu0 %v1465
          %1725 = vmatmul.mubr.f32.gmra.mrb[0].mxu0 %v1464
          %v1726 = vpop.f32.mrb[0].mxu0
          %v1727 = vadd.f32 %v1588, %v1726
          %v1728 = vpop.f32.mrb[0].mxu0
          %1729 = vmatprep.mubr.f32.mxu0 %v1468
          %1730 = vmatmul.mubr.f32.gmra.mrb[0].mxu0 %v1467
          %v1731 = vpop.f32.mrb[0].mxu0
          %v1732 = vadd.f32 %v1589, %v1731
          %v1733 = vpop.f32.mrb[0].mxu0
          %1734 = vmatprep.mubr.f32.mxu0 %v1471
          %1735 = vmatmul.mubr.f32.gmra.mrb[0].mxu0 %v1470
          %v1736 = vpop.f32.mrb[0].mxu0
          %v1737 = vadd.f32 %v1590, %v1736
          %v1738 = vpop.f32.mrb[0].mxu0
          %1739 = vmatprep.mubr.f32.mxu0 %v1474
          %1740 = vmatmul.mubr.f32.gmra.mrb[0].mxu0 %v1473
          %v1741 = vpop.f32.mrb[0].mxu0
          %v1742 = vadd.f32 %v1591, %v1741
          %v1743 = vpop.f32.mrb[0].mxu0
          %1744 = vmatprep.mubr.f32.mxu0 %v1477
          %1745 = vmatmul.mubr.f32.gmra.mrb[0].mxu0 %v1476
          %v1746 = vpop.f32.mrb[0].mxu0
          %v1747 = vadd.f32 %v1592, %v1746
          %v1748 = vpop.f32.mrb[0].mxu0
          %1749 = vmatprep.mubr.f32.mxu0 %v1480
          %1750 = vmatmul.mubr.f32.gmra.mrb[0].mxu0 %v1479
          %v1751 = vpop.f32.mrb[0].mxu0
          %v1752 = vadd.f32 %v1593, %v1751
          %v1753 = vpop.f32.mrb[0].mxu0
          %1754 = vmatprep.mubr.f32.mxu0 %v1483
          %1755 = vmatmul.mubr.f32.gmra.mrb[0].mxu0 %v1482
          %v1756 = vpop.f32.mrb[0].mxu0
          %v1757 = vadd.f32 %v1594, %v1756
          %v1758 = vpop.f32.mrb[0].mxu0
          %1759 = vmatprep.mubr.f32.mxu0 %v1486
          %1760 = vmatmul.mubr.f32.gmra.mrb[0].mxu0 %v1485
          %v1761 = vpop.f32.mrb[0].mxu0
          %v1762 = vadd.f32 %v1595, %v1761
          %v1763 = vpop.f32.mrb[0].mxu0
          %1764 = vmatprep.mubr.f32.mxu0 %v1489
          %1765 = vmatmul.mubr.f32.gmra.mrb[0].mxu0 %v1488
          %v1766 = vpop.f32.mrb[0].mxu0
          %v1767 = vadd.f32 %v1596, %v1766
          %v1768 = vpop.f32.mrb[0].mxu0
          %1769 = vmatprep.mubr.f32.mxu0 %v1492
          %1770 = vmatmul.mubr.f32.gmra.mrb[0].mxu0 %v1491
          %v1771 = vpop.f32.mrb[0].mxu0
          %v1772 = vadd.f32 %v1597, %v1771
          %v1773 = vpop.f32.mrb[0].mxu0
          %1774 = vmatprep.mubr.f32.mxu0 %v1495
          %1775 = vmatmul.mubr.f32.gmra.mrb[0].mxu0 %v1494
          %v1776 = vpop.f32.mrb[0].mxu0
          %v1777 = vadd.f32 %v1598, %v1776
          %v1778 = vpop.f32.mrb[0].mxu0
          %1779 = vmatprep.mubr.f32.mxu0 %v1498
          %1780 = vmatmul.mubr.f32.gmra.mrb[0].mxu0 %v1497
          %v1781 = vpop.f32.mrb[0].mxu0
          %v1782 = vadd.f32 %v1599, %v1781
          %v1783 = vpop.f32.mrb[0].mxu0
          %1784 = vmatprep.mubr.f32.mxu0 %v1501
          %1785 = vmatmul.mubr.f32.gmra.mrb[0].mxu0 %v1500
          %v1786 = vpop.f32.mrb[0].mxu0
          %v1787 = vadd.f32 %v1600, %v1786
          %v1788 = vpop.f32.mrb[0].mxu0
          %1789 = vmatprep.mubr.f32.mxu0 %v1504
          %1790 = vmatmul.mubr.f32.gmra.mrb[0].mxu0 %v1503
          %v1791 = vpop.f32.mrb[0].mxu0
          %v1792 = vadd.f32 %v1601, %v1791
          %v1793 = vpop.f32.mrb[0].mxu0
          %1794 = vmatprep.mubr.f32.mxu0 %v1507
          %1795 = vmatmul.mubr.f32.gmra.mrb[0].mxu0 %v1506
          %v1796 = vpop.f32.mrb[0].mxu0
          %v1797 = vadd.f32 %v1602, %v1796
          %v1798 = vpop.f32.mrb[0].mxu0
          %1799 = vmatprep.mubr.f32.mxu0 %v1510
          %1800 = vmatmul.mubr.f32.gmra.mrb[0].mxu0 %v1509
          %v1801 = vpop.f32.mrb[0].mxu0
          %v1802 = vadd.f32 %v1603, %v1801
          %v1803 = vpop.f32.mrb[0].mxu0
          %1804 = vmatprep.mubr.f32.mxu0 %v1513
          %1805 = vmatmul.mubr.f32.gmra.mrb[0].mxu0 %v1512
          %v1806 = vpop.f32.mrb[0].mxu0
          %v1807 = vadd.f32 %v1604, %v1806
          %v1808 = vpop.f32.mrb[0].mxu0
          %1809 = vmatprep.mubr.f32.mxu0 %v1516
          %1810 = vmatmul.mubr.f32.gmra.mrb[0].mxu0 %v1515
          %v1811 = vpop.f32.mrb[0].mxu0
          %v1812 = vadd.f32 %v1605, %v1811
          %v1813 = vpop.f32.mrb[0].mxu0
          %1814 = vmatprep.mubr.f32.mxu0 %v1519
          %1815 = vmatmul.mubr.f32.gmra.mrb[0].mxu0 %v1518
          %v1816 = vpop.f32.mrb[0].mxu0
          %v1817 = vadd.f32 %v1606, %v1816
          %v1818 = vpop.f32.mrb[0].mxu0
          %1819 = vmatprep.mubr.f32.mxu0 %v1522
          %1820 = vmatmul.mubr.f32.gmra.mrb[0].mxu0 %v1521
          %v1821 = vpop.f32.mrb[0].mxu0
          %v1822 = vadd.f32 %v1607, %v1821
          %v1823 = vpop.f32.mrb[0].mxu0
          %1824 = vmatprep.mubr.f32.mxu0 %v1525
          %1825 = vmatmul.mubr.f32.gmra.mrb[0].mxu0 %v1524
          %v1826 = vpop.f32.mrb[0].mxu0
          %v1827 = vadd.f32 %v1608, %v1826
          %v1828 = vpop.f32.mrb[0].mxu0
          %1829 = vmatprep.mubr.f32.mxu0 %v1528
          %1830 = vmatmul.mubr.f32.gmra.mrb[0].mxu0 %v1527
          %v1831 = vpop.f32.mrb[0].mxu0
          %v1832 = vadd.f32 %v1609, %v1831
          %v1833 = vpop.f32.mrb[0].mxu0
          %1834 = vdwg.mxu0
          %1835 = vmatprep.subr.mxu0 0.0
          %1836 = vmatpush1.msra.mxu0 %v1562
          %1837 = vmatprep.subr.mxu0 0.0
          %1838 = vmatpush1.msra.mxu0 %v1563
          %1839 = vmatprep.subr.mxu0 0.0
          %1840 = vmatpush1.msra.mxu0 %v1564
          %1841 = vmatprep.subr.mxu0 0.0
          %1842 = vmatpush1.msra.mxu0 %v1565
          %1843 = vmatprep.subr.mxu0 0.0
          %1844 = vmatpush1.msra.mxu0 %v1566
          %1845 = vmatprep.subr.mxu0 0.0
          %1846 = vmatpush1.msra.mxu0 %v1567
          %1847 = vmatprep.subr.mxu0 0.0
          %1848 = vmatpush1.msra.mxu0 %v1568
          %1849 = vmatprep.subr.mxu0 0.0
          %1850 = vmatpush1.msra.mxu0 %v1569
          %1851 = vmatprep.subr.mxu0 0.0
          %1852 = vmatpush1.msra.mxu0 %v1570
          %1853 = vmatprep.subr.mxu0 0.0
          %1854 = vmatpush1.msra.mxu0 %v1571
          %1855 = vmatprep.subr.mxu0 0.0
          %1856 = vmatpush1.msra.mxu0 %v1572
          %1857 = vmatprep.subr.mxu0 0.0
          %1858 = vmatpush1.msra.mxu0 %v1573
          %1859 = vmatprep.subr.mxu0 0.0
          %1860 = vmatpush1.msra.mxu0 %v1574
          %1861 = vmatprep.subr.mxu0 0.0
          %1862 = vmatpush1.msra.mxu0 %v1575
          %1863 = vmatprep.subr.mxu0 0.0
          %1864 = vmatpush1.msra.mxu0 %v1576
          %1865 = vmatprep.subr.mxu0 0.0
          %1866 = vmatpush1.msra.mxu0 %v1577
          %1867 = vmatprep.subr.mxu0 0.0
          %1868 = vmatpush1.msra.mxu0 0.0
          %1869 = vmatprep.subr.mxu0 0.0
          %1870 = vmatpush1.msra.mxu0 0.0
          %1871 = vmatprep.subr.mxu0 0.0
          %1872 = vmatpush1.msra.mxu0 0.0
          %1873 = vmatprep.subr.mxu0 0.0
          %1874 = vmatpush1.msra.mxu0 0.0
          %1875 = vmatprep.subr.mxu0 0.0
          %1876 = vmatpush1.msra.mxu0 0.0
          %1877 = vmatprep.subr.mxu0 0.0
          %1878 = vmatpush1.msra.mxu0 0.0
          %1879 = vmatprep.subr.mxu0 0.0
          %1880 = vmatpush1.msra.mxu0 0.0
          %1881 = vmatprep.subr.mxu0 0.0
          %1882 = vmatpush1.msra.mxu0 0.0
          %1883 = vmatprep.subr.mxu0 0.0
          %1884 = vmatpush1.msra.mxu0 0.0
          %1885 = vmatprep.subr.mxu0 0.0
          %1886 = vmatpush1.msra.mxu0 0.0
          %1887 = vmatprep.subr.mxu0 0.0
          %1888 = vmatpush1.msra.mxu0 0.0
          %1889 = vmatprep.subr.mxu0 0.0
          %1890 = vmatpush1.msra.mxu0 0.0
          %1891 = vmatprep.subr.mxu0 0.0
          %1892 = vmatpush1.msra.mxu0 0.0
          %1893 = vmatprep.subr.mxu0 0.0
          %1894 = vmatpush1.msra.mxu0 0.0
          %1895 = vmatprep.subr.mxu0 0.0
          %1896 = vmatpush1.msra.mxu0 0.0
          %1897 = vmatprep.subr.mxu0 0.0
          %1898 = vmatpush1.msra.mxu0 0.0
          %1899 = vmatprep.mubr.f32.mxu0 0.0
          %1900 = vmatmul.mubr.f32.gmra.mrb[0].mxu0 %v1436
          %v1901 = vpop.f32.mrb[0].mxu0
          %v1902 = vadd.f32 %v1677, %v1901
          %v1903 = vpop.f32.mrb[0].mxu0
          %1904 = vmatprep.mubr.f32.mxu0 0.0
          %1905 = vmatmul.mubr.f32.gmra.mrb[0].mxu0 %v1439
          %v1906 = vpop.f32.mrb[0].mxu0
          %v1907 = vadd.f32 %v1682, %v1906
          %v1908 = vpop.f32.mrb[0].mxu0
          %1909 = vmatprep.mubr.f32.mxu0 0.0
          %1910 = vmatmul.mubr.f32.gmra.mrb[0].mxu0 %v1442
          %v1911 = vpop.f32.mrb[0].mxu0
          %v1912 = vadd.f32 %v1687, %v1911
          %v1913 = vpop.f32.mrb[0].mxu0
          %1914 = vmatprep.mubr.f32.mxu0 0.0
          %1915 = vmatmul.mubr.f32.gmra.mrb[0].mxu0 %v1445
          %v1916 = vpop.f32.mrb[0].mxu0
          %v1917 = vadd.f32 %v1692, %v1916
          %v1918 = vpop.f32.mrb[0].mxu0
          %1919 = vmatprep.mubr.f32.mxu0 0.0
          %1920 = vmatmul.mubr.f32.gmra.mrb[0].mxu0 %v1448
          %v1921 = vpop.f32.mrb[0].mxu0
          %v1922 = vadd.f32 %v1697, %v1921
          %v1923 = vpop.f32.mrb[0].mxu0
          %1924 = vmatprep.mubr.f32.mxu0 0.0
          %1925 = vmatmul.mubr.f32.gmra.mrb[0].mxu0 %v1451
          %v1926 = vpop.f32.mrb[0].mxu0
          %v1927 = vadd.f32 %v1702, %v1926
          %v1928 = vpop.f32.mrb[0].mxu0
          %1929 = vmatprep.mubr.f32.mxu0 0.0
          %1930 = vmatmul.mubr.f32.gmra.mrb[0].mxu0 %v1454
          %v1931 = vpop.f32.mrb[0].mxu0
          %v1932 = vadd.f32 %v1707, %v1931
          %v1933 = vpop.f32.mrb[0].mxu0
          %1934 = vmatprep.mubr.f32.mxu0 0.0
          %1935 = vmatmul.mubr.f32.gmra.mrb[0].mxu0 %v1457
          %v1936 = vpop.f32.mrb[0].mxu0
          %v1937 = vadd.f32 %v1712, %v1936
          %v1938 = vpop.f32.mrb[0].mxu0
          %1939 = vmatprep.mubr.f32.mxu0 0.0
          %1940 = vmatmul.mubr.f32.gmra.mrb[0].mxu0 %v1460
          %v1941 = vpop.f32.mrb[0].mxu0
          %v1942 = vadd.f32 %v1717, %v1941
          %v1943 = vpop.f32.mrb[0].mxu0
          %1944 = vmatprep.mubr.f32.mxu0 0.0
          %1945 = vmatmul.mubr.f32.gmra.mrb[0].mxu0 %v1463
          %v1946 = vpop.f32.mrb[0].mxu0
          %v1947 = vadd.f32 %v1722, %v1946
          %v1948 = vpop.f32.mrb[0].mxu0
          %1949 = vmatprep.mubr.f32.mxu0 0.0
          %1950 = vmatmul.mubr.f32.gmra.mrb[0].mxu0 %v1466
          %v1951 = vpop.f32.mrb[0].mxu0
          %v1952 = vadd.f32 %v1727, %v1951
          %v1953 = vpop.f32.mrb[0].mxu0
          %1954 = vmatprep.mubr.f32.mxu0 0.0
          %1955 = vmatmul.mubr.f32.gmra.mrb[0].mxu0 %v1469
          %v1956 = vpop.f32.mrb[0].mxu0
          %v1957 = vadd.f32 %v1732, %v1956
          %v1958 = vpop.f32.mrb[0].mxu0
          %1959 = vmatprep.mubr.f32.mxu0 0.0
          %1960 = vmatmul.mubr.f32.gmra.mrb[0].mxu0 %v1472
          %v1961 = vpop.f32.mrb[0].mxu0
          %v1962 = vadd.f32 %v1737, %v1961
          %v1963 = vpop.f32.mrb[0].mxu0
          %1964 = vmatprep.mubr.f32.mxu0 0.0
          %1965 = vmatmul.mubr.f32.gmra.mrb[0].mxu0 %v1475
          %v1966 = vpop.f32.mrb[0].mxu0
          %v1967 = vadd.f32 %v1742, %v1966
          %v1968 = vpop.f32.mrb[0].mxu0
          %1969 = vmatprep.mubr.f32.mxu0 0.0
          %1970 = vmatmul.mubr.f32.gmra.mrb[0].mxu0 %v1478
          %v1971 = vpop.f32.mrb[0].mxu0
          %v1972 = vadd.f32 %v1747, %v1971
          %v1973 = vpop.f32.mrb[0].mxu0
          %1974 = vmatprep.mubr.f32.mxu0 0.0
          %1975 = vmatmul.mubr.f32.gmra.mrb[0].mxu0 %v1481
          %v1976 = vpop.f32.mrb[0].mxu0
          %v1977 = vadd.f32 %v1752, %v1976
          %v1978 = vpop.f32.mrb[0].mxu0
          %1979 = vmatprep.mubr.f32.mxu0 0.0
          %1980 = vmatmul.mubr.f32.gmra.mrb[0].mxu0 %v1484
          %v1981 = vpop.f32.mrb[0].mxu0
          %v1982 = vadd.f32 %v1757, %v1981
          %v1983 = vpop.f32.mrb[0].mxu0
          %1984 = vmatprep.mubr.f32.mxu0 0.0
          %1985 = vmatmul.mubr.f32.gmra.mrb[0].mxu0 %v1487
          %v1986 = vpop.f32.mrb[0].mxu0
          %v1987 = vadd.f32 %v1762, %v1986
          %v1988 = vpop.f32.mrb[0].mxu0
          %1989 = vmatprep.mubr.f32.mxu0 0.0
          %1990 = vmatmul.mubr.f32.gmra.mrb[0].mxu0 %v1490
          %v1991 = vpop.f32.mrb[0].mxu0
          %v1992 = vadd.f32 %v1767, %v1991
          %v1993 = vpop.f32.mrb[0].mxu0
          %1994 = vmatprep.mubr.f32.mxu0 0.0
          %1995 = vmatmul.mubr.f32.gmra.mrb[0].mxu0 %v1493
          %v1996 = vpop.f32.mrb[0].mxu0
          %v1997 = vadd.f32 %v1772, %v1996
          %v1998 = vpop.f32.mrb[0].mxu0
          %1999 = vmatprep.mubr.f32.mxu0 0.0
          %2000 = vmatmul.mubr.f32.gmra.mrb[0].mxu0 %v1496
          %v2001 = vpop.f32.mrb[0].mxu0
          %v2002 = vadd.f32 %v1777, %v2001
          %v2003 = vpop.f32.mrb[0].mxu0
          %2004 = vmatprep.mubr.f32.mxu0 0.0
          %2005 = vmatmul.mubr.f32.gmra.mrb[0].mxu0 %v1499
          %v2006 = vpop.f32.mrb[0].mxu0
          %v2007 = vadd.f32 %v1782, %v2006
          %v2008 = vpop.f32.mrb[0].mxu0
          %2009 = vmatprep.mubr.f32.mxu0 0.0
          %2010 = vmatmul.mubr.f32.gmra.mrb[0].mxu0 %v1502
          %v2011 = vpop.f32.mrb[0].mxu0
          %v2012 = vadd.f32 %v1787, %v2011
          %v2013 = vpop.f32.mrb[0].mxu0
          %2014 = vmatprep.mubr.f32.mxu0 0.0
          %2015 = vmatmul.mubr.f32.gmra.mrb[0].mxu0 %v1505
          %v2016 = vpop.f32.mrb[0].mxu0
          %v2017 = vadd.f32 %v1792, %v2016
          %v2018 = vpop.f32.mrb[0].mxu0
          %2019 = vmatprep.mubr.f32.mxu0 0.0
          %2020 = vmatmul.mubr.f32.gmra.mrb[0].mxu0 %v1508
          %v2021 = vpop.f32.mrb[0].mxu0
          %v2022 = vadd.f32 %v1797, %v2021
          %v2023 = vpop.f32.mrb[0].mxu0
          %2024 = vmatprep.mubr.f32.mxu0 0.0
          %2025 = vmatmul.mubr.f32.gmra.mrb[0].mxu0 %v1511
          %v2026 = vpop.f32.mrb[0].mxu0
          %v2027 = vadd.f32 %v1802, %v2026
          %v2028 = vpop.f32.mrb[0].mxu0
          %2029 = vmatprep.mubr.f32.mxu0 0.0
          %2030 = vmatmul.mubr.f32.gmra.mrb[0].mxu0 %v1514
          %v2031 = vpop.f32.mrb[0].mxu0
          %v2032 = vadd.f32 %v1807, %v2031
          %v2033 = vpop.f32.mrb[0].mxu0
          %2034 = vmatprep.mubr.f32.mxu0 0.0
          %2035 = vmatmul.mubr.f32.gmra.mrb[0].mxu0 %v1517
          %v2036 = vpop.f32.mrb[0].mxu0
          %v2037 = vadd.f32 %v1812, %v2036
          %v2038 = vpop.f32.mrb[0].mxu0
          %2039 = vmatprep.mubr.f32.mxu0 0.0
          %2040 = vmatmul.mubr.f32.gmra.mrb[0].mxu0 %v1520
          %v2041 = vpop.f32.mrb[0].mxu0
          %v2042 = vadd.f32 %v1817, %v2041
          %v2043 = vpop.f32.mrb[0].mxu0
          %2044 = vmatprep.mubr.f32.mxu0 0.0
          %2045 = vmatmul.mubr.f32.gmra.mrb[0].mxu0 %v1523
          %v2046 = vpop.f32.mrb[0].mxu0
          %v2047 = vadd.f32 %v1822, %v2046
          %v2048 = vpop.f32.mrb[0].mxu0
          %2049 = vmatprep.mubr.f32.mxu0 0.0
          %2050 = vmatmul.mubr.f32.gmra.mrb[0].mxu0 %v1526
          %v2051 = vpop.f32.mrb[0].mxu0
          %v2052 = vadd.f32 %v1827, %v2051
          %v2053 = vpop.f32.mrb[0].mxu0
          %2054 = vmatprep.mubr.f32.mxu0 0.0
          %2055 = vmatmul.mubr.f32.gmra.mrb[0].mxu0 %v1529
          %v2056 = vpop.f32.mrb[0].mxu0
          %v2057 = vadd.f32 %v1832, %v2056
          %v2058 = vpop.f32.mrb[0].mxu0
          %2059 = vdwg.mxu0
          %2060 = vst [vmem:[%s439] sm:$0xff] %v1902
          %2061 = vst [vmem:[%s439 + $0x8] sm:$0xff] %v1907
          %2062 = vst [vmem:[%s439 + $0x10] sm:$0xff] %v1912
          %2063 = vst [vmem:[%s439 + $0x18] sm:$0xff] %v1917
          %2064 = vst [vmem:[%s439 + $0x20] sm:$0xff] %v1922
          %2065 = vst [vmem:[%s439 + $0x28] sm:$0xff] %v1927
          %2066 = vst [vmem:[%s439 + $0x30] sm:$0xff] %v1932
          %2067 = vst [vmem:[%s439 + $0x38] sm:$0xff] %v1937
          %2068 = vst [vmem:[%s439 + $0x40] sm:$0xff] %v1942
          %2069 = vst [vmem:[%s439 + $0x48] sm:$0xff] %v1947
          %2070 = vst [vmem:[%s439 + $0x50] sm:$0xff] %v1952
          %2071 = vst [vmem:[%s439 + $0x58] sm:$0xff] %v1957
          %2072 = vst [vmem:[%s439 + $0x60] sm:$0xff] %v1962
          %2073 = vst [vmem:[%s439 + $0x68] sm:$0xff] %v1967
          %2074 = vst [vmem:[%s439 + $0x70] sm:$0xff] %v1972
          %2075 = vst [vmem:[%s439 + $0x78] sm:$0xff] %v1977
          %2076 = vst [vmem:[%s439 + $0x80] sm:$0xff] %v1982
          %2077 = vst [vmem:[%s439 + $0x88] sm:$0xff] %v1987
          %2078 = vst [vmem:[%s439 + $0x90] sm:$0xff] %v1992
          %2079 = vst [vmem:[%s439 + $0x98] sm:$0xff] %v1997
          %2080 = vst [vmem:[%s439 + $0xa0] sm:$0xff] %v2002
          %2081 = vst [vmem:[%s439 + $0xa8] sm:$0xff] %v2007
          %2082 = vst [vmem:[%s439 + $0xb0] sm:$0xff] %v2012
          %2083 = vst [vmem:[%s439 + $0xb8] sm:$0xff] %v2017
          %2084 = vst [vmem:[%s439 + $0xc0] sm:$0xff] %v2022
          %2085 = vst [vmem:[%s439 + $0xc8] sm:$0xff] %v2027
          %2086 = vst [vmem:[%s439 + $0xd0] sm:$0xff] %v2032
          %2087 = vst [vmem:[%s439 + $0xd8] sm:$0xff] %v2037
          %2088 = vst [vmem:[%s439 + $0xe0] sm:$0xff] %v2042
          %2089 = vst [vmem:[%s439 + $0xe8] sm:$0xff] %v2047
          %2090 = vst [vmem:[%s439 + $0xf0] sm:$0xff] %v2052
          %2091 = vst [vmem:[%s439 + $0xf8] sm:$0xff] %v2057
        $region98: #{comp_graph_conv.1} parent=81 // pred_fallthru
          _
        %s2092 = sand.u32 %s195, 1
        %s2093 = scalar_lea.sflag [#allocation6], %s2092
        %s2094 = sand.u32 %s195, 1
        %s2095 = smul.addr %s2094, 256
        %s2096 = scalar_lea.vmem [#allocation5], %s2095
        // Predicated region
        $region99: #{comp_graph_conv.1} parent=81 // pred_check
          %p2097 = pneg %p205
        $region100: #{comp_graph_conv.1} parent=81 // pred_check_branch
          %2099 = sbr.rel (%p2097) target = $region102
        $region101: #{comp_graph_conv.1} parent=81 // pred_region
          %s2100 = smul.u32 32, %s24
          %s2102 = ssub.s32 4096, 4096
          %2103 = vsyncadd %s2093, %s2102
          %s2104 = smul.addr %s2100, 128
          %s2105 = scalar_lea.hbm %s6, %s2104
          %s2106 = sshll.u32 %s2096, 4
          %s2107 = int_to_ptr.vmem [resolvable:$true] %s2106
          %2112 = dma.vmem_to_hbm [thread:$0]  %s2107, 4096, %s2105, %s2093, 128, 128, 8
        $region102: #{comp_graph_conv.1} parent=81 // pred_fallthru
          _
      $region82: #{comp_graph_conv.1} parent=5 // pred_fallthru
        _
      %p2113 = scmp.le.s32.totalorder 2, %s15
      // Predicated region
      $region103: #{comp_graph_conv.1} parent=5 // pred_check
        %p2114 = pneg %p2113
      $region104: #{comp_graph_conv.1} parent=5 // pred_check_branch
        %2116 = sbr.rel (%p2114) target = $region106
      $region105: #{comp_graph_conv.1} parent=5 // pred_region
        %s2117 = ssub.s32 %s15, 2
        // Predicated region
        $region107: #{comp_graph_conv.1} parent=105 // pred_check
          %p2118 = pneg %p211
        $region108: #{comp_graph_conv.1} parent=105 // pred_check_branch
          %2120 = sbr.rel (%p2118) target = $region110
        $region109: #{comp_graph_conv.1} parent=105 // pred_region
          %s2121 = sand.u32 %s196, 1
          %s2122 = scalar_lea.sflag [#allocation6], %s2121
          %s2123 = sand.u32 %s196, 1
          %s2124 = smul.addr %s2123, 256
          %s2125 = scalar_lea.vmem [#allocation5], %s2124
          %2126 = dma.done %s2122, 4096
        $region110: #{comp_graph_conv.1} parent=105 // pred_fallthru
          _
      $region106: #{comp_graph_conv.1} parent=5 // pred_fallthru
        _
    $region6: #{comp_graph_conv.1} parent=1 // loop_footer
      %s19 = sadd.s32 1, %s15
    $region7: #{comp_graph_conv.1} parent=1 // loop_footer_branch
      %14 = sbr.rel target = $region3
    $region8: #{comp_graph_conv.1} parent=1 // loop_exit
      _
    %2127 = vsyncpa [#allocation6], 1
    %s2128 = scalar_lea.sflag [#allocation6], 1
    %2129 = vsyncpa %s2128, 1

</llo_original>
